<compile_context>
chip_gen: v7x
topology: tpu7x:2x2x1
jax: 0.10.0
libtpu: 0.0.40
codegen_flags: <defaults>
</compile_context>

<pallas_src>
import jax
import jax.numpy as jnp
from jax.experimental import pallas as pl
from jax.experimental.pallas import tpu as pltpu

MAT_DIFF_LOSS_SCALE = 0.001


def _make_loss_kernel(tb, num_classes, d, true_batch, mat_diff_loss_scale):
    scale = float(mat_diff_loss_scale)

    def kernel(target_ref, pred_ref, trans_ref, out_ref):
        i = pl.program_id(0)

        # ---- validity mask for the ragged tail block (no host-side padding) ----
        row_ids = jax.lax.broadcasted_iota(jnp.int32, (tb, 1), 0) + i * tb
        valid = row_ids < true_batch                                   # [tb, 1] bool

        # ---- NLL term: sum_b pred[b, target[b]] via block-wide one-hot select ----
        col = jax.lax.broadcasted_iota(jnp.int32, (tb, num_classes), 1)
        onehot = (col == target_ref[...]) & valid                      # [tb, C]
        picked_sum = jnp.sum(jnp.where(onehot, pred_ref[...], 0.0))    # scalar

        # ---- regularizer: batched Gram over the whole block on the MXU ----
        t = trans_ref[...]                                             # [tb, D, D]
        gram = jax.lax.dot_general(                                    # T_b @ T_b^T, batched
            t, t, (((2,), (2,)), ((0,), (0,))),
            preferred_element_type=jnp.float32)                        # [tb, D, D] f32
        ii = jax.lax.broadcasted_iota(jnp.int32, (1, d, d), 1)
        jj = jax.lax.broadcasted_iota(jnp.int32, (1, d, d), 2)
        eye = (ii == jj).astype(jnp.float32)                           # [1, D, D]
        diff = gram - eye
        sq = jnp.sum(diff * diff, axis=2)                              # [tb, D]
        sq = jnp.sum(sq, axis=1, keepdims=True)                        # [tb, 1]
        fro = jnp.where(valid, jnp.sqrt(sq), 0.0)                      # NaN-safe tail mask
        reg_sum = jnp.sum(fro)                                         # scalar

        partial = scale * reg_sum - picked_sum
        # Lane-dense per-block partial (unmasked vst); wrapper reads [:, 0, 0].
        out_ref[...] = jnp.full((1, 8, 128), partial, dtype=jnp.float32)

    return kernel


def get_loss(pred, target, trans_feat, mat_diff_loss_scale=MAT_DIFF_LOSS_SCALE,
             use_bf16_gram=False):
    """total_loss = nll_loss(pred, target) + scale * feature_transform_reguliarzer(trans_feat)."""
    pred = jnp.asarray(pred, jnp.float32)
    trans_dtype = jnp.bfloat16 if use_bf16_gram else jnp.float32
    trans_feat = jnp.asarray(trans_feat, trans_dtype)
    target = jnp.asarray(target, jnp.int32).reshape(-1, 1)             # [B, 1] for VMEM

    b, c = pred.shape
    d = trans_feat.shape[1]

    # Batch-blocked grid; ragged last block handled in-kernel by the validity mask.
    tb = min(b, 256)
    n_blocks = (b + tb - 1) // tb

    kernel = _make_loss_kernel(tb, c, d, b, mat_diff_loss_scale)

    partials = pl.pallas_call(
        kernel,
        out_shape=jax.ShapeDtypeStruct((n_blocks, 8, 128), jnp.float32),
        grid=(n_blocks,),
        in_specs=[
            pl.BlockSpec((tb, 1), lambda i: (i, 0)),                   # target block (VMEM)
            pl.BlockSpec((tb, c), lambda i: (i, 0)),                   # pred block
            pl.BlockSpec((tb, d, d), lambda i: (i, 0, 0)),             # trans block
        ],
        out_specs=pl.BlockSpec((1, 8, 128), lambda i: (i, 0, 0)),      # per-block partial
        compiler_params=pltpu.CompilerParams(
            dimension_semantics=("parallel",),                         # blocks independent (2 TCs on v7x)
            vmem_limit_bytes=40 << 20),
    )(target, pred, trans_feat)

    return jnp.sum(partials[:, 0, 0]) / b


def _reference_loss(pred, target, trans_feat, scale=MAT_DIFF_LOSS_SCALE):
    b = pred.shape[0]
    nll = -jnp.mean(pred[jnp.arange(b), target])
    d = trans_feat.shape[1]
    eye = jnp.eye(d, dtype=jnp.float32)[None]
    diff = jnp.einsum('bij,bkj->bik', trans_feat, trans_feat) - eye
    mat = jnp.mean(jnp.sqrt(jnp.sum(diff * diff, axis=(1, 2))))
    return nll + mat * scale


if __name__ == "__main__":
    key = jax.random.PRNGKey(0)
    k1, k2, k3 = jax.random.split(key, 3)

    B, C, D = 8, 16, 64  # batch, num classes, PointNet feature-transform dim

    logits = jax.random.normal(k1, (B, C), dtype=jnp.float32)
    pred = jax.nn.log_softmax(logits, axis=-1)          # like F.log_softmax output
    target = jax.random.randint(k2, (B,), 0, C, dtype=jnp.int32)
    trans_feat = jax.random.normal(k3, (B, D, D), dtype=jnp.float32) * 0.1

    total_loss = get_loss(pred, target, trans_feat)
    jax.block_until_ready(total_loss)

    ref = _reference_loss(pred, target, trans_feat)
    assert jnp.allclose(total_loss, ref, rtol=1e-5, atol=1e-5), (total_loss, ref)

    print("KERNEL_OK")
</pallas_src>

<mosaic_0001>
module attributes {stable_mosaic.version = 11 : i64} {
  func.func @kernel(%arg0: i32, %arg1: memref<8x1xi32, #tpu.memory_space<vmem>>, %arg2: memref<8x16xf32, #tpu.memory_space<vmem>>, %arg3: memref<8x64x64xf32, #tpu.memory_space<vmem>>, %arg4: memref<1x8x128xf32, #tpu.memory_space<vmem>>) attributes {dimension_semantics = [#tpu.dimension_semantics<parallel>], iteration_bounds = array<i64: 1>, scalar_prefetch = 0 : i64, scratch_operands = 0 : i64, tpu.core_type = #tpu.core_type<tc>, window_params = [{transform_indices = @transform_0, window_bounds = array<i64: 8, 1>}, {transform_indices = @transform_1, window_bounds = array<i64: 8, 16>}, {transform_indices = @transform_2, window_bounds = array<i64: 8, 64, 64>}, {transform_indices = @transform_3, window_bounds = array<i64: 1, 8, 128>}]} {
    %0 = tpu.iota {dimensions = array<i32: 0>} : vector<8x1xi32>
    %c8_i32 = arith.constant 8 : i32
    %1 = arith.muli %arg0, %c8_i32 : i32
    %2 = vector.broadcast %1 : i32 to vector<8x1xi32>
    %3 = arith.addi %0, %2 : vector<8x1xi32>
    %c8_i32_0 = arith.constant 8 : i32
    %4 = vector.broadcast %c8_i32_0 : i32 to vector<8x1xi32>
    %5 = arith.cmpi slt, %3, %4 : vector<8x1xi32>
    %6 = tpu.iota {dimensions = array<i32: 1>} : vector<8x16xi32>
    %c0 = arith.constant 0 : index
    %c0_1 = arith.constant 0 : index
    %7 = vector.load %arg1[%c0, %c0_1] : memref<8x1xi32, #tpu.memory_space<vmem>>, vector<8x1xi32>
    %8 = vector.broadcast %7 : vector<8x1xi32> to vector<8x16xi32>
    %9 = arith.cmpi eq, %6, %8 : vector<8x16xi32>
    %10 = vector.broadcast %5 : vector<8x1xi1> to vector<8x16xi1>
    %11 = arith.andi %9, %10 : vector<8x16xi1>
    %c0_2 = arith.constant 0 : index
    %c0_3 = arith.constant 0 : index
    %12 = vector.load %arg2[%c0_2, %c0_3] : memref<8x16xf32, #tpu.memory_space<vmem>>, vector<8x16xf32>
    %cst = arith.constant 0.000000e+00 : f32
    %13 = vector.broadcast %cst : f32 to vector<8x16xf32>
    %14 = arith.select %11, %12, %13 : vector<8x16xi1>, vector<8x16xf32>
    %15 = vector.shape_cast %14 : vector<8x16xf32> to vector<1x8x16xf32>
    %cst_4 = arith.constant dense<0.000000e+00> : vector<1xf32>
    %16 = vector.multi_reduction <add>, %15, %cst_4 [1, 2] : vector<1x8x16xf32> to vector<1xf32>
    %17 = vector.shape_cast %16 : vector<1xf32> to vector<1x1x1xf32>
    %18 = vector.extract %17[0, 0, 0] : f32 from vector<1x1x1xf32>
    %c0_5 = arith.constant 0 : index
    %c0_6 = arith.constant 0 : index
    %c0_7 = arith.constant 0 : index
    %19 = vector.load %arg3[%c0_5, %c0_6, %c0_7] : memref<8x64x64xf32, #tpu.memory_space<vmem>>, vector<8x64x64xf32>
    %cst_8 = arith.constant dense<0.000000e+00> : vector<8x64x64xf32>
    %20 = tpu.matmul %19, %19, %cst_8 {dimension_numbers = #tpu.dot_dimension_numbers<[2], [2], [1], [1], [0, 0, 0, 1, 1, 1], [0], [0]>} : vector<8x64x64xf32>, vector<8x64x64xf32>, vector<8x64x64xf32> -> vector<8x64x64xf32>
    %21 = tpu.iota {dimensions = array<i32: 1>} : vector<1x64x64xi32>
    %22 = tpu.iota {dimensions = array<i32: 2>} : vector<1x64x64xi32>
    %23 = arith.cmpi eq, %21, %22 : vector<1x64x64xi32>
    %24 = arith.extui %23 : vector<1x64x64xi1> to vector<1x64x64xi32>
    %25 = arith.sitofp %24 : vector<1x64x64xi32> to vector<1x64x64xf32>
    %26 = vector.broadcast %25 : vector<1x64x64xf32> to vector<8x64x64xf32>
    %27 = arith.subf %20, %26 : vector<8x64x64xf32>
    %28 = arith.mulf %27, %27 : vector<8x64x64xf32>
    %cst_9 = arith.constant dense<0.000000e+00> : vector<8x64xf32>
    %29 = vector.multi_reduction <add>, %28, %cst_9 [2] : vector<8x64x64xf32> to vector<8x64xf32>
    %cst_10 = arith.constant dense<0.000000e+00> : vector<8xf32>
    %30 = vector.multi_reduction <add>, %29, %cst_10 [1] : vector<8x64xf32> to vector<8xf32>
    %31 = vector.shape_cast %30 : vector<8xf32> to vector<8x1xf32>
    %32 = math.sqrt %31 : vector<8x1xf32>
    %cst_11 = arith.constant 0.000000e+00 : f32
    %33 = vector.broadcast %cst_11 : f32 to vector<8x1xf32>
    %34 = arith.select %5, %32, %33 : vector<8x1xi1>, vector<8x1xf32>
    %35 = vector.shape_cast %34 : vector<8x1xf32> to vector<1x8x1xf32>
    %cst_12 = arith.constant dense<0.000000e+00> : vector<1xf32>
    %36 = vector.multi_reduction <add>, %35, %cst_12 [1, 2] : vector<1x8x1xf32> to vector<1xf32>
    %37 = vector.shape_cast %36 : vector<1xf32> to vector<1x1x1xf32>
    %38 = vector.extract %37[0, 0, 0] : f32 from vector<1x1x1xf32>
    %cst_13 = arith.constant 1.000000e-03 : f32
    %39 = arith.mulf %cst_13, %38 : f32
    %40 = arith.subf %39, %18 : f32
    %41 = vector.broadcast %40 : f32 to vector<1x8x128xf32>
    %c0_14 = arith.constant 0 : index
    %c0_15 = arith.constant 0 : index
    %c0_16 = arith.constant 0 : index
    %42 = vector.load %arg4[%c0_14, %c0_15, %c0_16] : memref<1x8x128xf32, #tpu.memory_space<vmem>>, vector<1x8x128xf32>
    tpu.vector_store %arg4[%c0_14, %c0_15, %c0_16], %41 {strides = array<i32>} : memref<1x8x128xf32, #tpu.memory_space<vmem>>, vector<1x8x128xf32>,
    return
  }
  func.func @transform_0(%arg0: i32) -> (i32, i32) {
    %c0_i32 = arith.constant 0 : i32
    %c0_i32_0 = arith.constant 0 : i32
    return %arg0, %c0_i32 : i32, i32
  }
  func.func @transform_1(%arg0: i32) -> (i32, i32) {
    %c0_i32 = arith.constant 0 : i32
    %c0_i32_0 = arith.constant 0 : i32
    return %arg0, %c0_i32 : i32, i32
  }
  func.func @transform_2(%arg0: i32) -> (i32, i32, i32) {
    %c0_i32 = arith.constant 0 : i32
    %c0_i32_0 = arith.constant 0 : i32
    %c0_i32_1 = arith.constant 0 : i32
    return %arg0, %c0_i32, %c0_i32_0 : i32, i32, i32
  }
  func.func @transform_3(%arg0: i32) -> (i32, i32, i32) {
    %c0_i32 = arith.constant 0 : i32
    %c0_i32_0 = arith.constant 0 : i32
    %c0_i32_1 = arith.constant 0 : i32
    return %arg0, %c0_i32, %c0_i32_0 : i32, i32, i32
  }
}

</mosaic_0001>

<llo_original>
// kernel: tpu_custom_call.1
$region0: #{tpu_custom_call.1}
  #allocation0 [shape = 'u32[]', space=smem, size = 0x4, offset = 0x4, fixed_abs, tag = 'smem constant byte address 0x4 - core index']
  #allocation1 [shape = 'u32[144,128]{1,0:T(1,128)}', space=vmem, size = 0x12000, scoped, tag = 'internal scratch']
  %s0 = inlined_call_operand.vmem [shape: s32[8,1], index: 0, kind: input, shape index: {}]
  %s1 = inlined_call_operand.vmem [shape: f32[8,16], index: 1, kind: input, shape index: {}]
  %s2 = inlined_call_operand.hbm [shape: f32[8,64,64], index: 2, kind: input, shape index: {}]
  %s3 = inlined_call_operand.hbm [shape: f32[1,8,128], index: 3, kind: output, shape index: {}]
  %s4 = sld [smem:[#allocation0]]
  $region26: #{tpu_custom_call.1} parent=0
    _
  %s6 = ssub.s32 1, %s4
  %s7 = scalar_select 0, %s6, %s4
  $region1: #{tpu_custom_call.1} parent=0
    #allocation2 [shape = 'u8[262144]{0}', space=vmem, size = 0x40000, scoped, tag = 'input window, operand 2, single buffered']
    #allocation3 [shape = 's32[1]{0}', space=sflag, size = 0x4, scoped, tag = 'scoped memory for tpu_custom_call.1']
    #allocation4 [shape = 's32[1]{0}', space=sflag, size = 0x4, scoped, tag = 'scoped memory for tpu_custom_call.1']
    #allocation5 [shape = 'u8[4096]{0}', space=vmem, size = 0x1000, scoped, tag = 'output window, operand 0, single buffered']
    %8 = vsyncpa [#allocation3], 0
    %9 = vsyncpa [#allocation4], 0
    // Predicated region
    $region2: #{tpu_custom_call.1} parent=1 // pred_check
      _
    $region3: #{tpu_custom_call.1} parent=1 // pred_check_branch
      %11 = sbr.rel (0) target = $region5
    $region4: #{tpu_custom_call.1} parent=1 // pred_region
      _
    $region5: #{tpu_custom_call.1} parent=1 // pred_fallthru
      _
    // Predicated region
    $region6: #{tpu_custom_call.1} parent=1 // pred_check
      _
    $region7: #{tpu_custom_call.1} parent=1 // pred_check_branch
      %13 = sbr.rel (0) target = $region9
    $region8: #{tpu_custom_call.1} parent=1 // pred_region
      _
    $region9: #{tpu_custom_call.1} parent=1 // pred_fallthru
      _
    // Predicated region
    $region10: #{tpu_custom_call.1} parent=1 // pred_check
      _
    $region11: #{tpu_custom_call.1} parent=1 // pred_check_branch
      %15 = sbr.rel (0) target = $region13
    $region12: #{tpu_custom_call.1} parent=1 // pred_region
      %s17 = ssub.s32 8192, 8192
      %18 = vsyncadd [#allocation3], %s17
      %s19 = sshll.u32 [#allocation2], 4
      %s20 = int_to_ptr.vmem [resolvable:$true] %s19
      %25 = dma.hbm_to_vmem [thread:$0]  %s2, 8192, %s20, [#allocation3], 128, 128, 8
    $region13: #{tpu_custom_call.1} parent=1 // pred_fallthru
      _
    // Predicated region
    $region14: #{tpu_custom_call.1} parent=1 // pred_check
      _
    $region15: #{tpu_custom_call.1} parent=1 // pred_check_branch
      %27 = sbr.rel (0) target = $region17
    $region16: #{tpu_custom_call.1} parent=1 // pred_region
      %28 = dma.done [#allocation3], 8192
    $region17: #{tpu_custom_call.1} parent=1 // pred_fallthru
      _
    %v29 = vlaneseq
    %v30 = vshrl.u32 %v29, 7
    %s31 = smul.u32 0, 8
    %v32 = vstv %s31
    %v33 = vadd.s32 %v30, %v32
    %vm34 = vcmp.lt.s32.totalorder %v33, 8
    %v35 = vlaneseq
    %v36 = vand.u32 %v35, 127
    %v37 = vld [vmem:[%s0] sm:$0xff]
    %38 = vset.pattern.permute.xlu0 0
    %39 = vperm.xlu0 %38, %v37
    %v40 = vpop.permute.xlu0 %39
    %vm41 = vcmp.eq.s32.totalorder %v36, %v40
    %v42 = vsel %vm34, 1, 0
    %vm43 = vcmp.eq.s32.totalorder %v42, 1
    %vm44 = vmand %vm41, %vm43
    %v45 = vld [vmem:[%s1] sm:$0xff]
    %v46 = vsel %vm44, %v45, 0.0
    %vm47 = vcmask 130048
    %v48 = vsel %vm47, %v46, 0.0
    %49 = vadd.xlane.f32.xlu0 %v48
    %v50 = vpop.xlane.xlu0 %49
    %v51 = vrot.slane %v50, 4
    %v52 = vadd.f32 %v50, %v51
    %v53 = vrot.slane %v52, 2
    %v54 = vadd.f32 %v52, %v53
    %v55 = vrot.slane %v54, 1
    %v56 = vadd.f32 %v54, %v55
    %s57 = vtos %v56
    %v58 = vld [vmem:[#allocation2] sm:$0xff]
    %v59 = vld [vmem:[#allocation2 + $0x8] sm:$0xff]
    %v60 = vld [vmem:[#allocation2 + $0x10] sm:$0xff]
    %v61 = vld [vmem:[#allocation2 + $0x18] sm:$0xff]
    %v62 = vld [vmem:[#allocation2 + $0x20] sm:$0xff]
    %v63 = vld [vmem:[#allocation2 + $0x28] sm:$0xff]
    %v64 = vld [vmem:[#allocation2 + $0x30] sm:$0xff]
    %v65 = vld [vmem:[#allocation2 + $0x38] sm:$0xff]
    %v66 = vld [vmem:[#allocation2 + $0x40] sm:$0xff]
    %v67 = vld [vmem:[#allocation2 + $0x48] sm:$0xff]
    %v68 = vld [vmem:[#allocation2 + $0x50] sm:$0xff]
    %v69 = vld [vmem:[#allocation2 + $0x58] sm:$0xff]
    %v70 = vld [vmem:[#allocation2 + $0x60] sm:$0xff]
    %v71 = vld [vmem:[#allocation2 + $0x68] sm:$0xff]
    %v72 = vld [vmem:[#allocation2 + $0x70] sm:$0xff]
    %v73 = vld [vmem:[#allocation2 + $0x78] sm:$0xff]
    %v74 = vld [vmem:[#allocation2 + $0x80] sm:$0xff]
    %v75 = vld [vmem:[#allocation2 + $0x88] sm:$0xff]
    %v76 = vld [vmem:[#allocation2 + $0x90] sm:$0xff]
    %v77 = vld [vmem:[#allocation2 + $0x98] sm:$0xff]
    %v78 = vld [vmem:[#allocation2 + $0xa0] sm:$0xff]
    %v79 = vld [vmem:[#allocation2 + $0xa8] sm:$0xff]
    %v80 = vld [vmem:[#allocation2 + $0xb0] sm:$0xff]
    %v81 = vld [vmem:[#allocation2 + $0xb8] sm:$0xff]
    %v82 = vld [vmem:[#allocation2 + $0xc0] sm:$0xff]
    %v83 = vld [vmem:[#allocation2 + $0xc8] sm:$0xff]
    %v84 = vld [vmem:[#allocation2 + $0xd0] sm:$0xff]
    %v85 = vld [vmem:[#allocation2 + $0xd8] sm:$0xff]
    %v86 = vld [vmem:[#allocation2 + $0xe0] sm:$0xff]
    %v87 = vld [vmem:[#allocation2 + $0xe8] sm:$0xff]
    %v88 = vld [vmem:[#allocation2 + $0xf0] sm:$0xff]
    %v89 = vld [vmem:[#allocation2 + $0xf8] sm:$0xff]
    %v90 = vld [vmem:[#allocation2 + $0x100] sm:$0xff]
    %v91 = vld [vmem:[#allocation2 + $0x108] sm:$0xff]
    %v92 = vld [vmem:[#allocation2 + $0x110] sm:$0xff]
    %v93 = vld [vmem:[#allocation2 + $0x118] sm:$0xff]
    %v94 = vld [vmem:[#allocation2 + $0x120] sm:$0xff]
    %v95 = vld [vmem:[#allocation2 + $0x128] sm:$0xff]
    %v96 = vld [vmem:[#allocation2 + $0x130] sm:$0xff]
    %v97 = vld [vmem:[#allocation2 + $0x138] sm:$0xff]
    %v98 = vld [vmem:[#allocation2 + $0x140] sm:$0xff]
    %v99 = vld [vmem:[#allocation2 + $0x148] sm:$0xff]
    %v100 = vld [vmem:[#allocation2 + $0x150] sm:$0xff]
    %v101 = vld [vmem:[#allocation2 + $0x158] sm:$0xff]
    %v102 = vld [vmem:[#allocation2 + $0x160] sm:$0xff]
    %v103 = vld [vmem:[#allocation2 + $0x168] sm:$0xff]
    %v104 = vld [vmem:[#allocation2 + $0x170] sm:$0xff]
    %v105 = vld [vmem:[#allocation2 + $0x178] sm:$0xff]
    %v106 = vld [vmem:[#allocation2 + $0x180] sm:$0xff]
    %v107 = vld [vmem:[#allocation2 + $0x188] sm:$0xff]
    %v108 = vld [vmem:[#allocation2 + $0x190] sm:$0xff]
    %v109 = vld [vmem:[#allocation2 + $0x198] sm:$0xff]
    %v110 = vld [vmem:[#allocation2 + $0x1a0] sm:$0xff]
    %v111 = vld [vmem:[#allocation2 + $0x1a8] sm:$0xff]
    %v112 = vld [vmem:[#allocation2 + $0x1b0] sm:$0xff]
    %v113 = vld [vmem:[#allocation2 + $0x1b8] sm:$0xff]
    %v114 = vld [vmem:[#allocation2 + $0x1c0] sm:$0xff]
    %v115 = vld [vmem:[#allocation2 + $0x1c8] sm:$0xff]
    %v116 = vld [vmem:[#allocation2 + $0x1d0] sm:$0xff]
    %v117 = vld [vmem:[#allocation2 + $0x1d8] sm:$0xff]
    %v118 = vld [vmem:[#allocation2 + $0x1e0] sm:$0xff]
    %v119 = vld [vmem:[#allocation2 + $0x1e8] sm:$0xff]
    %v120 = vld [vmem:[#allocation2 + $0x1f0] sm:$0xff]
    %v121 = vld [vmem:[#allocation2 + $0x1f8] sm:$0xff]
    %vm122 = vcmask 523264
    %v124 = vsel %vm122, %v58, 0
    %v127 = vsel %vm122, %v59, 0
    %v130 = vsel %vm122, %v60, 0
    %v133 = vsel %vm122, %v61, 0
    %v136 = vsel %vm122, %v62, 0
    %v139 = vsel %vm122, %v63, 0
    %v142 = vsel %vm122, %v64, 0
    %v145 = vsel %vm122, %v65, 0
    %147 = vmatprep.subr.mxu0 0.0
    %148 = vmatpush1.xpose.msra.mxu0 %v124
    %149 = vmatprep.subr.mxu0 0.0
    %150 = vmatpush1.xpose.msra.mxu0 %v127
    %151 = vmatprep.subr.mxu0 0.0
    %152 = vmatpush1.xpose.msra.mxu0 %v130
    %153 = vmatprep.subr.mxu0 0.0
    %154 = vmatpush1.xpose.msra.mxu0 %v133
    %155 = vmatprep.subr.mxu0 0.0
    %156 = vmatpush1.xpose.msra.mxu0 %v136
    %157 = vmatprep.subr.mxu0 0.0
    %158 = vmatpush1.xpose.msra.mxu0 %v139
    %159 = vmatprep.subr.mxu0 0.0
    %160 = vmatpush1.xpose.msra.mxu0 %v142
    %161 = vmatprep.subr.mxu0 0.0
    %162 = vmatpush1.xpose.msra.mxu0 %v145
    %163 = vmatprep.subr.mxu0 0.0
    %164 = vmatpush1.xpose.msra.mxu0 0.0
    %165 = vmatprep.subr.mxu0 0.0
    %166 = vmatpush1.xpose.msra.mxu0 0.0
    %167 = vmatprep.subr.mxu0 0.0
    %168 = vmatpush1.xpose.msra.mxu0 0.0
    %169 = vmatprep.subr.mxu0 0.0
    %170 = vmatpush1.xpose.msra.mxu0 0.0
    %171 = vmatprep.subr.mxu0 0.0
    %172 = vmatpush1.xpose.msra.mxu0 0.0
    %173 = vmatprep.subr.mxu0 0.0
    %174 = vmatpush1.xpose.msra.mxu0 0.0
    %175 = vmatprep.subr.mxu0 0.0
    %176 = vmatpush1.xpose.msra.mxu0 0.0
    %177 = vmatprep.subr.mxu0 0.0
    %178 = vmatpush1.xpose.msra.mxu0 0.0
    %179 = vmatprep.subr.mxu0 0.0
    %180 = vmatpush1.xpose.msra.mxu0 0.0
    %181 = vmatprep.subr.mxu0 0.0
    %182 = vmatpush1.xpose.msra.mxu0 0.0
    %183 = vmatprep.subr.mxu0 0.0
    %184 = vmatpush1.xpose.msra.mxu0 0.0
    %185 = vmatprep.subr.mxu0 0.0
    %186 = vmatpush1.xpose.msra.mxu0 0.0
    %187 = vmatprep.subr.mxu0 0.0
    %188 = vmatpush1.xpose.msra.mxu0 0.0
    %189 = vmatprep.subr.mxu0 0.0
    %190 = vmatpush1.xpose.msra.mxu0 0.0
    %191 = vmatprep.subr.mxu0 0.0
    %192 = vmatpush1.xpose.msra.mxu0 0.0
    %193 = vmatprep.subr.mxu0 0.0
    %194 = vmatpush1.xpose.msra.mxu0 0.0
    %195 = vmatprep.subr.mxu0 0.0
    %196 = vmatpush1.xpose.msra.mxu0 0.0
    %197 = vmatprep.subr.mxu0 0.0
    %198 = vmatpush1.xpose.msra.mxu0 0.0
    %199 = vmatprep.subr.mxu0 0.0
    %200 = vmatpush1.xpose.msra.mxu0 0.0
    %201 = vmatprep.subr.mxu0 0.0
    %202 = vmatpush1.xpose.msra.mxu0 0.0
    %203 = vmatprep.subr.mxu0 0.0
    %204 = vmatpush1.xpose.msra.mxu0 0.0
    %205 = vmatprep.subr.mxu0 0.0
    %206 = vmatpush1.xpose.msra.mxu0 0.0
    %207 = vmatprep.subr.mxu0 0.0
    %208 = vmatpush1.xpose.msra.mxu0 0.0
    %209 = vmatprep.subr.mxu0 0.0
    %210 = vmatpush1.xpose.msra.mxu0 0.0
    %211 = vmatprep.mubr.f32.mxu0 0.0
    %212 = vmatmul.mubr.f32.gmra.mrb[0].mxu0 %v124
    %v213 = vpop.f32.mrb[0].mxu0
    %v214 = vadd.f32 0.0, %v213
    %v215 = vpop.f32.mrb[0].mxu0
    %216 = vmatprep.mubr.f32.mxu0 0.0
    %217 = vmatmul.mubr.f32.gmra.mrb[0].mxu0 %v127
    %v218 = vpop.f32.mrb[0].mxu0
    %v219 = vadd.f32 0.0, %v218
    %v220 = vpop.f32.mrb[0].mxu0
    %221 = vmatprep.mubr.f32.mxu0 0.0
    %222 = vmatmul.mubr.f32.gmra.mrb[0].mxu0 %v130
    %v223 = vpop.f32.mrb[0].mxu0
    %v224 = vadd.f32 0.0, %v223
    %v225 = vpop.f32.mrb[0].mxu0
    %226 = vmatprep.mubr.f32.mxu0 0.0
    %227 = vmatmul.mubr.f32.gmra.mrb[0].mxu0 %v133
    %v228 = vpop.f32.mrb[0].mxu0
    %v229 = vadd.f32 0.0, %v228
    %v230 = vpop.f32.mrb[0].mxu0
    %231 = vmatprep.mubr.f32.mxu0 0.0
    %232 = vmatmul.mubr.f32.gmra.mrb[0].mxu0 %v136
    %v233 = vpop.f32.mrb[0].mxu0
    %v234 = vadd.f32 0.0, %v233
    %v235 = vpop.f32.mrb[0].mxu0
    %236 = vmatprep.mubr.f32.mxu0 0.0
    %237 = vmatmul.mubr.f32.gmra.mrb[0].mxu0 %v139
    %v238 = vpop.f32.mrb[0].mxu0
    %v239 = vadd.f32 0.0, %v238
    %v240 = vpop.f32.mrb[0].mxu0
    %241 = vmatprep.mubr.f32.mxu0 0.0
    %242 = vmatmul.mubr.f32.gmra.mrb[0].mxu0 %v142
    %v243 = vpop.f32.mrb[0].mxu0
    %v244 = vadd.f32 0.0, %v243
    %v245 = vpop.f32.mrb[0].mxu0
    %246 = vmatprep.mubr.f32.mxu0 0.0
    %247 = vmatmul.mubr.f32.gmra.mrb[0].mxu0 %v145
    %v248 = vpop.f32.mrb[0].mxu0
    %v249 = vadd.f32 0.0, %v248
    %v250 = vpop.f32.mrb[0].mxu0
    %251 = vdwg.mxu0
    %v253 = vsel %vm122, %v66, 0
    %v256 = vsel %vm122, %v67, 0
    %v259 = vsel %vm122, %v68, 0
    %v262 = vsel %vm122, %v69, 0
    %v265 = vsel %vm122, %v70, 0
    %v268 = vsel %vm122, %v71, 0
    %v271 = vsel %vm122, %v72, 0
    %v274 = vsel %vm122, %v73, 0
    %276 = vmatprep.subr.mxu0 0.0
    %277 = vmatpush1.xpose.msra.mxu0 %v253
    %278 = vmatprep.subr.mxu0 0.0
    %279 = vmatpush1.xpose.msra.mxu0 %v256
    %280 = vmatprep.subr.mxu0 0.0
    %281 = vmatpush1.xpose.msra.mxu0 %v259
    %282 = vmatprep.subr.mxu0 0.0
    %283 = vmatpush1.xpose.msra.mxu0 %v262
    %284 = vmatprep.subr.mxu0 0.0
    %285 = vmatpush1.xpose.msra.mxu0 %v265
    %286 = vmatprep.subr.mxu0 0.0
    %287 = vmatpush1.xpose.msra.mxu0 %v268
    %288 = vmatprep.subr.mxu0 0.0
    %289 = vmatpush1.xpose.msra.mxu0 %v271
    %290 = vmatprep.subr.mxu0 0.0
    %291 = vmatpush1.xpose.msra.mxu0 %v274
    %292 = vmatprep.subr.mxu0 0.0
    %293 = vmatpush1.xpose.msra.mxu0 0.0
    %294 = vmatprep.subr.mxu0 0.0
    %295 = vmatpush1.xpose.msra.mxu0 0.0
    %296 = vmatprep.subr.mxu0 0.0
    %297 = vmatpush1.xpose.msra.mxu0 0.0
    %298 = vmatprep.subr.mxu0 0.0
    %299 = vmatpush1.xpose.msra.mxu0 0.0
    %300 = vmatprep.subr.mxu0 0.0
    %301 = vmatpush1.xpose.msra.mxu0 0.0
    %302 = vmatprep.subr.mxu0 0.0
    %303 = vmatpush1.xpose.msra.mxu0 0.0
    %304 = vmatprep.subr.mxu0 0.0
    %305 = vmatpush1.xpose.msra.mxu0 0.0
    %306 = vmatprep.subr.mxu0 0.0
    %307 = vmatpush1.xpose.msra.mxu0 0.0
    %308 = vmatprep.subr.mxu0 0.0
    %309 = vmatpush1.xpose.msra.mxu0 0.0
    %310 = vmatprep.subr.mxu0 0.0
    %311 = vmatpush1.xpose.msra.mxu0 0.0
    %312 = vmatprep.subr.mxu0 0.0
    %313 = vmatpush1.xpose.msra.mxu0 0.0
    %314 = vmatprep.subr.mxu0 0.0
    %315 = vmatpush1.xpose.msra.mxu0 0.0
    %316 = vmatprep.subr.mxu0 0.0
    %317 = vmatpush1.xpose.msra.mxu0 0.0
    %318 = vmatprep.subr.mxu0 0.0
    %319 = vmatpush1.xpose.msra.mxu0 0.0
    %320 = vmatprep.subr.mxu0 0.0
    %321 = vmatpush1.xpose.msra.mxu0 0.0
    %322 = vmatprep.subr.mxu0 0.0
    %323 = vmatpush1.xpose.msra.mxu0 0.0
    %324 = vmatprep.subr.mxu0 0.0
    %325 = vmatpush1.xpose.msra.mxu0 0.0
    %326 = vmatprep.subr.mxu0 0.0
    %327 = vmatpush1.xpose.msra.mxu0 0.0
    %328 = vmatprep.subr.mxu0 0.0
    %329 = vmatpush1.xpose.msra.mxu0 0.0
    %330 = vmatprep.subr.mxu0 0.0
    %331 = vmatpush1.xpose.msra.mxu0 0.0
    %332 = vmatprep.subr.mxu0 0.0
    %333 = vmatpush1.xpose.msra.mxu0 0.0
    %334 = vmatprep.subr.mxu0 0.0
    %335 = vmatpush1.xpose.msra.mxu0 0.0
    %336 = vmatprep.subr.mxu0 0.0
    %337 = vmatpush1.xpose.msra.mxu0 0.0
    %338 = vmatprep.subr.mxu0 0.0
    %339 = vmatpush1.xpose.msra.mxu0 0.0
    %340 = vmatprep.mubr.f32.mxu0 0.0
    %341 = vmatmul.mubr.f32.gmra.mrb[0].mxu0 %v253
    %v342 = vpop.f32.mrb[0].mxu0
    %v343 = vadd.f32 0.0, %v342
    %v344 = vpop.f32.mrb[0].mxu0
    %345 = vmatprep.mubr.f32.mxu0 0.0
    %346 = vmatmul.mubr.f32.gmra.mrb[0].mxu0 %v256
    %v347 = vpop.f32.mrb[0].mxu0
    %v348 = vadd.f32 0.0, %v347
    %v349 = vpop.f32.mrb[0].mxu0
    %350 = vmatprep.mubr.f32.mxu0 0.0
    %351 = vmatmul.mubr.f32.gmra.mrb[0].mxu0 %v259
    %v352 = vpop.f32.mrb[0].mxu0
    %v353 = vadd.f32 0.0, %v352
    %v354 = vpop.f32.mrb[0].mxu0
    %355 = vmatprep.mubr.f32.mxu0 0.0
    %356 = vmatmul.mubr.f32.gmra.mrb[0].mxu0 %v262
    %v357 = vpop.f32.mrb[0].mxu0
    %v358 = vadd.f32 0.0, %v357
    %v359 = vpop.f32.mrb[0].mxu0
    %360 = vmatprep.mubr.f32.mxu0 0.0
    %361 = vmatmul.mubr.f32.gmra.mrb[0].mxu0 %v265
    %v362 = vpop.f32.mrb[0].mxu0
    %v363 = vadd.f32 0.0, %v362
    %v364 = vpop.f32.mrb[0].mxu0
    %365 = vmatprep.mubr.f32.mxu0 0.0
    %366 = vmatmul.mubr.f32.gmra.mrb[0].mxu0 %v268
    %v367 = vpop.f32.mrb[0].mxu0
    %v368 = vadd.f32 0.0, %v367
    %v369 = vpop.f32.mrb[0].mxu0
    %370 = vmatprep.mubr.f32.mxu0 0.0
    %371 = vmatmul.mubr.f32.gmra.mrb[0].mxu0 %v271
    %v372 = vpop.f32.mrb[0].mxu0
    %v373 = vadd.f32 0.0, %v372
    %v374 = vpop.f32.mrb[0].mxu0
    %375 = vmatprep.mubr.f32.mxu0 0.0
    %376 = vmatmul.mubr.f32.gmra.mrb[0].mxu0 %v274
    %v377 = vpop.f32.mrb[0].mxu0
    %v378 = vadd.f32 0.0, %v377
    %v379 = vpop.f32.mrb[0].mxu0
    %380 = vdwg.mxu0
    %v382 = vsel %vm122, %v74, 0
    %v385 = vsel %vm122, %v75, 0
    %v388 = vsel %vm122, %v76, 0
    %v391 = vsel %vm122, %v77, 0
    %v394 = vsel %vm122, %v78, 0
    %v397 = vsel %vm122, %v79, 0
    %v400 = vsel %vm122, %v80, 0
    %v403 = vsel %vm122, %v81, 0
    %405 = vmatprep.subr.mxu0 0.0
    %406 = vmatpush1.xpose.msra.mxu0 %v382
    %407 = vmatprep.subr.mxu0 0.0
    %408 = vmatpush1.xpose.msra.mxu0 %v385
    %409 = vmatprep.subr.mxu0 0.0
    %410 = vmatpush1.xpose.msra.mxu0 %v388
    %411 = vmatprep.subr.mxu0 0.0
    %412 = vmatpush1.xpose.msra.mxu0 %v391
    %413 = vmatprep.subr.mxu0 0.0
    %414 = vmatpush1.xpose.msra.mxu0 %v394
    %415 = vmatprep.subr.mxu0 0.0
    %416 = vmatpush1.xpose.msra.mxu0 %v397
    %417 = vmatprep.subr.mxu0 0.0
    %418 = vmatpush1.xpose.msra.mxu0 %v400
    %419 = vmatprep.subr.mxu0 0.0
    %420 = vmatpush1.xpose.msra.mxu0 %v403
    %421 = vmatprep.subr.mxu0 0.0
    %422 = vmatpush1.xpose.msra.mxu0 0.0
    %423 = vmatprep.subr.mxu0 0.0
    %424 = vmatpush1.xpose.msra.mxu0 0.0
    %425 = vmatprep.subr.mxu0 0.0
    %426 = vmatpush1.xpose.msra.mxu0 0.0
    %427 = vmatprep.subr.mxu0 0.0
    %428 = vmatpush1.xpose.msra.mxu0 0.0
    %429 = vmatprep.subr.mxu0 0.0
    %430 = vmatpush1.xpose.msra.mxu0 0.0
    %431 = vmatprep.subr.mxu0 0.0
    %432 = vmatpush1.xpose.msra.mxu0 0.0
    %433 = vmatprep.subr.mxu0 0.0
    %434 = vmatpush1.xpose.msra.mxu0 0.0
    %435 = vmatprep.subr.mxu0 0.0
    %436 = vmatpush1.xpose.msra.mxu0 0.0
    %437 = vmatprep.subr.mxu0 0.0
    %438 = vmatpush1.xpose.msra.mxu0 0.0
    %439 = vmatprep.subr.mxu0 0.0
    %440 = vmatpush1.xpose.msra.mxu0 0.0
    %441 = vmatprep.subr.mxu0 0.0
    %442 = vmatpush1.xpose.msra.mxu0 0.0
    %443 = vmatprep.subr.mxu0 0.0
    %444 = vmatpush1.xpose.msra.mxu0 0.0
    %445 = vmatprep.subr.mxu0 0.0
    %446 = vmatpush1.xpose.msra.mxu0 0.0
    %447 = vmatprep.subr.mxu0 0.0
    %448 = vmatpush1.xpose.msra.mxu0 0.0
    %449 = vmatprep.subr.mxu0 0.0
    %450 = vmatpush1.xpose.msra.mxu0 0.0
    %451 = vmatprep.subr.mxu0 0.0
    %452 = vmatpush1.xpose.msra.mxu0 0.0
    %453 = vmatprep.subr.mxu0 0.0
    %454 = vmatpush1.xpose.msra.mxu0 0.0
    %455 = vmatprep.subr.mxu0 0.0
    %456 = vmatpush1.xpose.msra.mxu0 0.0
    %457 = vmatprep.subr.mxu0 0.0
    %458 = vmatpush1.xpose.msra.mxu0 0.0
    %459 = vmatprep.subr.mxu0 0.0
    %460 = vmatpush1.xpose.msra.mxu0 0.0
    %461 = vmatprep.subr.mxu0 0.0
    %462 = vmatpush1.xpose.msra.mxu0 0.0
    %463 = vmatprep.subr.mxu0 0.0
    %464 = vmatpush1.xpose.msra.mxu0 0.0
    %465 = vmatprep.subr.mxu0 0.0
    %466 = vmatpush1.xpose.msra.mxu0 0.0
    %467 = vmatprep.subr.mxu0 0.0
    %468 = vmatpush1.xpose.msra.mxu0 0.0
    %469 = vmatprep.mubr.f32.mxu0 0.0
    %470 = vmatmul.mubr.f32.gmra.mrb[0].mxu0 %v382
    %v471 = vpop.f32.mrb[0].mxu0
    %v472 = vadd.f32 0.0, %v471
    %v473 = vpop.f32.mrb[0].mxu0
    %474 = vmatprep.mubr.f32.mxu0 0.0
    %475 = vmatmul.mubr.f32.gmra.mrb[0].mxu0 %v385
    %v476 = vpop.f32.mrb[0].mxu0
    %v477 = vadd.f32 0.0, %v476
    %v478 = vpop.f32.mrb[0].mxu0
    %479 = vmatprep.mubr.f32.mxu0 0.0
    %480 = vmatmul.mubr.f32.gmra.mrb[0].mxu0 %v388
    %v481 = vpop.f32.mrb[0].mxu0
    %v482 = vadd.f32 0.0, %v481
    %v483 = vpop.f32.mrb[0].mxu0
    %484 = vmatprep.mubr.f32.mxu0 0.0
    %485 = vmatmul.mubr.f32.gmra.mrb[0].mxu0 %v391
    %v486 = vpop.f32.mrb[0].mxu0
    %v487 = vadd.f32 0.0, %v486
    %v488 = vpop.f32.mrb[0].mxu0
    %489 = vmatprep.mubr.f32.mxu0 0.0
    %490 = vmatmul.mubr.f32.gmra.mrb[0].mxu0 %v394
    %v491 = vpop.f32.mrb[0].mxu0
    %v492 = vadd.f32 0.0, %v491
    %v493 = vpop.f32.mrb[0].mxu0
    %494 = vmatprep.mubr.f32.mxu0 0.0
    %495 = vmatmul.mubr.f32.gmra.mrb[0].mxu0 %v397
    %v496 = vpop.f32.mrb[0].mxu0
    %v497 = vadd.f32 0.0, %v496
    %v498 = vpop.f32.mrb[0].mxu0
    %499 = vmatprep.mubr.f32.mxu0 0.0
    %500 = vmatmul.mubr.f32.gmra.mrb[0].mxu0 %v400
    %v501 = vpop.f32.mrb[0].mxu0
    %v502 = vadd.f32 0.0, %v501
    %v503 = vpop.f32.mrb[0].mxu0
    %504 = vmatprep.mubr.f32.mxu0 0.0
    %505 = vmatmul.mubr.f32.gmra.mrb[0].mxu0 %v403
    %v506 = vpop.f32.mrb[0].mxu0
    %v507 = vadd.f32 0.0, %v506
    %v508 = vpop.f32.mrb[0].mxu0
    %509 = vdwg.mxu0
    %v511 = vsel %vm122, %v82, 0
    %v514 = vsel %vm122, %v83, 0
    %v517 = vsel %vm122, %v84, 0
    %v520 = vsel %vm122, %v85, 0
    %v523 = vsel %vm122, %v86, 0
    %v526 = vsel %vm122, %v87, 0
    %v529 = vsel %vm122, %v88, 0
    %v532 = vsel %vm122, %v89, 0
    %534 = vmatprep.subr.mxu0 0.0
    %535 = vmatpush1.xpose.msra.mxu0 %v511
    %536 = vmatprep.subr.mxu0 0.0
    %537 = vmatpush1.xpose.msra.mxu0 %v514
    %538 = vmatprep.subr.mxu0 0.0
    %539 = vmatpush1.xpose.msra.mxu0 %v517
    %540 = vmatprep.subr.mxu0 0.0
    %541 = vmatpush1.xpose.msra.mxu0 %v520
    %542 = vmatprep.subr.mxu0 0.0
    %543 = vmatpush1.xpose.msra.mxu0 %v523
    %544 = vmatprep.subr.mxu0 0.0
    %545 = vmatpush1.xpose.msra.mxu0 %v526
    %546 = vmatprep.subr.mxu0 0.0
    %547 = vmatpush1.xpose.msra.mxu0 %v529
    %548 = vmatprep.subr.mxu0 0.0
    %549 = vmatpush1.xpose.msra.mxu0 %v532
    %550 = vmatprep.subr.mxu0 0.0
    %551 = vmatpush1.xpose.msra.mxu0 0.0
    %552 = vmatprep.subr.mxu0 0.0
    %553 = vmatpush1.xpose.msra.mxu0 0.0
    %554 = vmatprep.subr.mxu0 0.0
    %555 = vmatpush1.xpose.msra.mxu0 0.0
    %556 = vmatprep.subr.mxu0 0.0
    %557 = vmatpush1.xpose.msra.mxu0 0.0
    %558 = vmatprep.subr.mxu0 0.0
    %559 = vmatpush1.xpose.msra.mxu0 0.0
    %560 = vmatprep.subr.mxu0 0.0
    %561 = vmatpush1.xpose.msra.mxu0 0.0
    %562 = vmatprep.subr.mxu0 0.0
    %563 = vmatpush1.xpose.msra.mxu0 0.0
    %564 = vmatprep.subr.mxu0 0.0
    %565 = vmatpush1.xpose.msra.mxu0 0.0
    %566 = vmatprep.subr.mxu0 0.0
    %567 = vmatpush1.xpose.msra.mxu0 0.0
    %568 = vmatprep.subr.mxu0 0.0
    %569 = vmatpush1.xpose.msra.mxu0 0.0
    %570 = vmatprep.subr.mxu0 0.0
    %571 = vmatpush1.xpose.msra.mxu0 0.0
    %572 = vmatprep.subr.mxu0 0.0
    %573 = vmatpush1.xpose.msra.mxu0 0.0
    %574 = vmatprep.subr.mxu0 0.0
    %575 = vmatpush1.xpose.msra.mxu0 0.0
    %576 = vmatprep.subr.mxu0 0.0
    %577 = vmatpush1.xpose.msra.mxu0 0.0
    %578 = vmatprep.subr.mxu0 0.0
    %579 = vmatpush1.xpose.msra.mxu0 0.0
    %580 = vmatprep.subr.mxu0 0.0
    %581 = vmatpush1.xpose.msra.mxu0 0.0
    %582 = vmatprep.subr.mxu0 0.0
    %583 = vmatpush1.xpose.msra.mxu0 0.0
    %584 = vmatprep.subr.mxu0 0.0
    %585 = vmatpush1.xpose.msra.mxu0 0.0
    %586 = vmatprep.subr.mxu0 0.0
    %587 = vmatpush1.xpose.msra.mxu0 0.0
    %588 = vmatprep.subr.mxu0 0.0
    %589 = vmatpush1.xpose.msra.mxu0 0.0
    %590 = vmatprep.subr.mxu0 0.0
    %591 = vmatpush1.xpose.msra.mxu0 0.0
    %592 = vmatprep.subr.mxu0 0.0
    %593 = vmatpush1.xpose.msra.mxu0 0.0
    %594 = vmatprep.subr.mxu0 0.0
    %595 = vmatpush1.xpose.msra.mxu0 0.0
    %596 = vmatprep.subr.mxu0 0.0
    %597 = vmatpush1.xpose.msra.mxu0 0.0
    %598 = vmatprep.mubr.f32.mxu0 0.0
    %599 = vmatmul.mubr.f32.gmra.mrb[0].mxu0 %v511
    %v600 = vpop.f32.mrb[0].mxu0
    %v601 = vadd.f32 0.0, %v600
    %v602 = vpop.f32.mrb[0].mxu0
    %603 = vmatprep.mubr.f32.mxu0 0.0
    %604 = vmatmul.mubr.f32.gmra.mrb[0].mxu0 %v514
    %v605 = vpop.f32.mrb[0].mxu0
    %v606 = vadd.f32 0.0, %v605
    %v607 = vpop.f32.mrb[0].mxu0
    %608 = vmatprep.mubr.f32.mxu0 0.0
    %609 = vmatmul.mubr.f32.gmra.mrb[0].mxu0 %v517
    %v610 = vpop.f32.mrb[0].mxu0
    %v611 = vadd.f32 0.0, %v610
    %v612 = vpop.f32.mrb[0].mxu0
    %613 = vmatprep.mubr.f32.mxu0 0.0
    %614 = vmatmul.mubr.f32.gmra.mrb[0].mxu0 %v520
    %v615 = vpop.f32.mrb[0].mxu0
    %v616 = vadd.f32 0.0, %v615
    %v617 = vpop.f32.mrb[0].mxu0
    %618 = vmatprep.mubr.f32.mxu0 0.0
    %619 = vmatmul.mubr.f32.gmra.mrb[0].mxu0 %v523
    %v620 = vpop.f32.mrb[0].mxu0
    %v621 = vadd.f32 0.0, %v620
    %v622 = vpop.f32.mrb[0].mxu0
    %623 = vmatprep.mubr.f32.mxu0 0.0
    %624 = vmatmul.mubr.f32.gmra.mrb[0].mxu0 %v526
    %v625 = vpop.f32.mrb[0].mxu0
    %v626 = vadd.f32 0.0, %v625
    %v627 = vpop.f32.mrb[0].mxu0
    %628 = vmatprep.mubr.f32.mxu0 0.0
    %629 = vmatmul.mubr.f32.gmra.mrb[0].mxu0 %v529
    %v630 = vpop.f32.mrb[0].mxu0
    %v631 = vadd.f32 0.0, %v630
    %v632 = vpop.f32.mrb[0].mxu0
    %633 = vmatprep.mubr.f32.mxu0 0.0
    %634 = vmatmul.mubr.f32.gmra.mrb[0].mxu0 %v532
    %v635 = vpop.f32.mrb[0].mxu0
    %v636 = vadd.f32 0.0, %v635
    %v637 = vpop.f32.mrb[0].mxu0
    %638 = vdwg.mxu0
    %v640 = vsel %vm122, %v90, 0
    %v643 = vsel %vm122, %v91, 0
    %v646 = vsel %vm122, %v92, 0
    %v649 = vsel %vm122, %v93, 0
    %v652 = vsel %vm122, %v94, 0
    %v655 = vsel %vm122, %v95, 0
    %v658 = vsel %vm122, %v96, 0
    %v661 = vsel %vm122, %v97, 0
    %663 = vmatprep.subr.mxu0 0.0
    %664 = vmatpush1.xpose.msra.mxu0 %v640
    %665 = vmatprep.subr.mxu0 0.0
    %666 = vmatpush1.xpose.msra.mxu0 %v643
    %667 = vmatprep.subr.mxu0 0.0
    %668 = vmatpush1.xpose.msra.mxu0 %v646
    %669 = vmatprep.subr.mxu0 0.0
    %670 = vmatpush1.xpose.msra.mxu0 %v649
    %671 = vmatprep.subr.mxu0 0.0
    %672 = vmatpush1.xpose.msra.mxu0 %v652
    %673 = vmatprep.subr.mxu0 0.0
    %674 = vmatpush1.xpose.msra.mxu0 %v655
    %675 = vmatprep.subr.mxu0 0.0
    %676 = vmatpush1.xpose.msra.mxu0 %v658
    %677 = vmatprep.subr.mxu0 0.0
    %678 = vmatpush1.xpose.msra.mxu0 %v661
    %679 = vmatprep.subr.mxu0 0.0
    %680 = vmatpush1.xpose.msra.mxu0 0.0
    %681 = vmatprep.subr.mxu0 0.0
    %682 = vmatpush1.xpose.msra.mxu0 0.0
    %683 = vmatprep.subr.mxu0 0.0
    %684 = vmatpush1.xpose.msra.mxu0 0.0
    %685 = vmatprep.subr.mxu0 0.0
    %686 = vmatpush1.xpose.msra.mxu0 0.0
    %687 = vmatprep.subr.mxu0 0.0
    %688 = vmatpush1.xpose.msra.mxu0 0.0
    %689 = vmatprep.subr.mxu0 0.0
    %690 = vmatpush1.xpose.msra.mxu0 0.0
    %691 = vmatprep.subr.mxu0 0.0
    %692 = vmatpush1.xpose.msra.mxu0 0.0
    %693 = vmatprep.subr.mxu0 0.0
    %694 = vmatpush1.xpose.msra.mxu0 0.0
    %695 = vmatprep.subr.mxu0 0.0
    %696 = vmatpush1.xpose.msra.mxu0 0.0
    %697 = vmatprep.subr.mxu0 0.0
    %698 = vmatpush1.xpose.msra.mxu0 0.0
    %699 = vmatprep.subr.mxu0 0.0
    %700 = vmatpush1.xpose.msra.mxu0 0.0
    %701 = vmatprep.subr.mxu0 0.0
    %702 = vmatpush1.xpose.msra.mxu0 0.0
    %703 = vmatprep.subr.mxu0 0.0
    %704 = vmatpush1.xpose.msra.mxu0 0.0
    %705 = vmatprep.subr.mxu0 0.0
    %706 = vmatpush1.xpose.msra.mxu0 0.0
    %707 = vmatprep.subr.mxu0 0.0
    %708 = vmatpush1.xpose.msra.mxu0 0.0
    %709 = vmatprep.subr.mxu0 0.0
    %710 = vmatpush1.xpose.msra.mxu0 0.0
    %711 = vmatprep.subr.mxu0 0.0
    %712 = vmatpush1.xpose.msra.mxu0 0.0
    %713 = vmatprep.subr.mxu0 0.0
    %714 = vmatpush1.xpose.msra.mxu0 0.0
    %715 = vmatprep.subr.mxu0 0.0
    %716 = vmatpush1.xpose.msra.mxu0 0.0
    %717 = vmatprep.subr.mxu0 0.0
    %718 = vmatpush1.xpose.msra.mxu0 0.0
    %719 = vmatprep.subr.mxu0 0.0
    %720 = vmatpush1.xpose.msra.mxu0 0.0
    %721 = vmatprep.subr.mxu0 0.0
    %722 = vmatpush1.xpose.msra.mxu0 0.0
    %723 = vmatprep.subr.mxu0 0.0
    %724 = vmatpush1.xpose.msra.mxu0 0.0
    %725 = vmatprep.subr.mxu0 0.0
    %726 = vmatpush1.xpose.msra.mxu0 0.0
    %727 = vmatprep.mubr.f32.mxu0 0.0
    %728 = vmatmul.mubr.f32.gmra.mrb[0].mxu0 %v640
    %v729 = vpop.f32.mrb[0].mxu0
    %v730 = vadd.f32 0.0, %v729
    %v731 = vpop.f32.mrb[0].mxu0
    %732 = vmatprep.mubr.f32.mxu0 0.0
    %733 = vmatmul.mubr.f32.gmra.mrb[0].mxu0 %v643
    %v734 = vpop.f32.mrb[0].mxu0
    %v735 = vadd.f32 0.0, %v734
    %v736 = vpop.f32.mrb[0].mxu0
    %737 = vmatprep.mubr.f32.mxu0 0.0
    %738 = vmatmul.mubr.f32.gmra.mrb[0].mxu0 %v646
    %v739 = vpop.f32.mrb[0].mxu0
    %v740 = vadd.f32 0.0, %v739
    %v741 = vpop.f32.mrb[0].mxu0
    %742 = vmatprep.mubr.f32.mxu0 0.0
    %743 = vmatmul.mubr.f32.gmra.mrb[0].mxu0 %v649
    %v744 = vpop.f32.mrb[0].mxu0
    %v745 = vadd.f32 0.0, %v744
    %v746 = vpop.f32.mrb[0].mxu0
    %747 = vmatprep.mubr.f32.mxu0 0.0
    %748 = vmatmul.mubr.f32.gmra.mrb[0].mxu0 %v652
    %v749 = vpop.f32.mrb[0].mxu0
    %v750 = vadd.f32 0.0, %v749
    %v751 = vpop.f32.mrb[0].mxu0
    %752 = vmatprep.mubr.f32.mxu0 0.0
    %753 = vmatmul.mubr.f32.gmra.mrb[0].mxu0 %v655
    %v754 = vpop.f32.mrb[0].mxu0
    %v755 = vadd.f32 0.0, %v754
    %v756 = vpop.f32.mrb[0].mxu0
    %757 = vmatprep.mubr.f32.mxu0 0.0
    %758 = vmatmul.mubr.f32.gmra.mrb[0].mxu0 %v658
    %v759 = vpop.f32.mrb[0].mxu0
    %v760 = vadd.f32 0.0, %v759
    %v761 = vpop.f32.mrb[0].mxu0
    %762 = vmatprep.mubr.f32.mxu0 0.0
    %763 = vmatmul.mubr.f32.gmra.mrb[0].mxu0 %v661
    %v764 = vpop.f32.mrb[0].mxu0
    %v765 = vadd.f32 0.0, %v764
    %v766 = vpop.f32.mrb[0].mxu0
    %767 = vdwg.mxu0
    %v769 = vsel %vm122, %v98, 0
    %v772 = vsel %vm122, %v99, 0
    %v775 = vsel %vm122, %v100, 0
    %v778 = vsel %vm122, %v101, 0
    %v781 = vsel %vm122, %v102, 0
    %v784 = vsel %vm122, %v103, 0
    %v787 = vsel %vm122, %v104, 0
    %v790 = vsel %vm122, %v105, 0
    %792 = vmatprep.subr.mxu0 0.0
    %793 = vmatpush1.xpose.msra.mxu0 %v769
    %794 = vmatprep.subr.mxu0 0.0
    %795 = vmatpush1.xpose.msra.mxu0 %v772
    %796 = vmatprep.subr.mxu0 0.0
    %797 = vmatpush1.xpose.msra.mxu0 %v775
    %798 = vmatprep.subr.mxu0 0.0
    %799 = vmatpush1.xpose.msra.mxu0 %v778
    %800 = vmatprep.subr.mxu0 0.0
    %801 = vmatpush1.xpose.msra.mxu0 %v781
    %802 = vmatprep.subr.mxu0 0.0
    %803 = vmatpush1.xpose.msra.mxu0 %v784
    %804 = vmatprep.subr.mxu0 0.0
    %805 = vmatpush1.xpose.msra.mxu0 %v787
    %806 = vmatprep.subr.mxu0 0.0
    %807 = vmatpush1.xpose.msra.mxu0 %v790
    %808 = vmatprep.subr.mxu0 0.0
    %809 = vmatpush1.xpose.msra.mxu0 0.0
    %810 = vmatprep.subr.mxu0 0.0
    %811 = vmatpush1.xpose.msra.mxu0 0.0
    %812 = vmatprep.subr.mxu0 0.0
    %813 = vmatpush1.xpose.msra.mxu0 0.0
    %814 = vmatprep.subr.mxu0 0.0
    %815 = vmatpush1.xpose.msra.mxu0 0.0
    %816 = vmatprep.subr.mxu0 0.0
    %817 = vmatpush1.xpose.msra.mxu0 0.0
    %818 = vmatprep.subr.mxu0 0.0
    %819 = vmatpush1.xpose.msra.mxu0 0.0
    %820 = vmatprep.subr.mxu0 0.0
    %821 = vmatpush1.xpose.msra.mxu0 0.0
    %822 = vmatprep.subr.mxu0 0.0
    %823 = vmatpush1.xpose.msra.mxu0 0.0
    %824 = vmatprep.subr.mxu0 0.0
    %825 = vmatpush1.xpose.msra.mxu0 0.0
    %826 = vmatprep.subr.mxu0 0.0
    %827 = vmatpush1.xpose.msra.mxu0 0.0
    %828 = vmatprep.subr.mxu0 0.0
    %829 = vmatpush1.xpose.msra.mxu0 0.0
    %830 = vmatprep.subr.mxu0 0.0
    %831 = vmatpush1.xpose.msra.mxu0 0.0
    %832 = vmatprep.subr.mxu0 0.0
    %833 = vmatpush1.xpose.msra.mxu0 0.0
    %834 = vmatprep.subr.mxu0 0.0
    %835 = vmatpush1.xpose.msra.mxu0 0.0
    %836 = vmatprep.subr.mxu0 0.0
    %837 = vmatpush1.xpose.msra.mxu0 0.0
    %838 = vmatprep.subr.mxu0 0.0
    %839 = vmatpush1.xpose.msra.mxu0 0.0
    %840 = vmatprep.subr.mxu0 0.0
    %841 = vmatpush1.xpose.msra.mxu0 0.0
    %842 = vmatprep.subr.mxu0 0.0
    %843 = vmatpush1.xpose.msra.mxu0 0.0
    %844 = vmatprep.subr.mxu0 0.0
    %845 = vmatpush1.xpose.msra.mxu0 0.0
    %846 = vmatprep.subr.mxu0 0.0
    %847 = vmatpush1.xpose.msra.mxu0 0.0
    %848 = vmatprep.subr.mxu0 0.0
    %849 = vmatpush1.xpose.msra.mxu0 0.0
    %850 = vmatprep.subr.mxu0 0.0
    %851 = vmatpush1.xpose.msra.mxu0 0.0
    %852 = vmatprep.subr.mxu0 0.0
    %853 = vmatpush1.xpose.msra.mxu0 0.0
    %854 = vmatprep.subr.mxu0 0.0
    %855 = vmatpush1.xpose.msra.mxu0 0.0
    %856 = vmatprep.mubr.f32.mxu0 0.0
    %857 = vmatmul.mubr.f32.gmra.mrb[0].mxu0 %v769
    %v858 = vpop.f32.mrb[0].mxu0
    %v859 = vadd.f32 0.0, %v858
    %v860 = vpop.f32.mrb[0].mxu0
    %861 = vmatprep.mubr.f32.mxu0 0.0
    %862 = vmatmul.mubr.f32.gmra.mrb[0].mxu0 %v772
    %v863 = vpop.f32.mrb[0].mxu0
    %v864 = vadd.f32 0.0, %v863
    %v865 = vpop.f32.mrb[0].mxu0
    %866 = vmatprep.mubr.f32.mxu0 0.0
    %867 = vmatmul.mubr.f32.gmra.mrb[0].mxu0 %v775
    %v868 = vpop.f32.mrb[0].mxu0
    %v869 = vadd.f32 0.0, %v868
    %v870 = vpop.f32.mrb[0].mxu0
    %871 = vmatprep.mubr.f32.mxu0 0.0
    %872 = vmatmul.mubr.f32.gmra.mrb[0].mxu0 %v778
    %v873 = vpop.f32.mrb[0].mxu0
    %v874 = vadd.f32 0.0, %v873
    %v875 = vpop.f32.mrb[0].mxu0
    %876 = vmatprep.mubr.f32.mxu0 0.0
    %877 = vmatmul.mubr.f32.gmra.mrb[0].mxu0 %v781
    %v878 = vpop.f32.mrb[0].mxu0
    %v879 = vadd.f32 0.0, %v878
    %v880 = vpop.f32.mrb[0].mxu0
    %881 = vmatprep.mubr.f32.mxu0 0.0
    %882 = vmatmul.mubr.f32.gmra.mrb[0].mxu0 %v784
    %v883 = vpop.f32.mrb[0].mxu0
    %v884 = vadd.f32 0.0, %v883
    %v885 = vpop.f32.mrb[0].mxu0
    %886 = vmatprep.mubr.f32.mxu0 0.0
    %887 = vmatmul.mubr.f32.gmra.mrb[0].mxu0 %v787
    %v888 = vpop.f32.mrb[0].mxu0
    %v889 = vadd.f32 0.0, %v888
    %v890 = vpop.f32.mrb[0].mxu0
    %891 = vmatprep.mubr.f32.mxu0 0.0
    %892 = vmatmul.mubr.f32.gmra.mrb[0].mxu0 %v790
    %v893 = vpop.f32.mrb[0].mxu0
    %v894 = vadd.f32 0.0, %v893
    %v895 = vpop.f32.mrb[0].mxu0
    %896 = vdwg.mxu0
    %v898 = vsel %vm122, %v106, 0
    %v901 = vsel %vm122, %v107, 0
    %v904 = vsel %vm122, %v108, 0
    %v907 = vsel %vm122, %v109, 0
    %v910 = vsel %vm122, %v110, 0
    %v913 = vsel %vm122, %v111, 0
    %v916 = vsel %vm122, %v112, 0
    %v919 = vsel %vm122, %v113, 0
    %921 = vmatprep.subr.mxu0 0.0
    %922 = vmatpush1.xpose.msra.mxu0 %v898
    %923 = vmatprep.subr.mxu0 0.0
    %924 = vmatpush1.xpose.msra.mxu0 %v901
    %925 = vmatprep.subr.mxu0 0.0
    %926 = vmatpush1.xpose.msra.mxu0 %v904
    %927 = vmatprep.subr.mxu0 0.0
    %928 = vmatpush1.xpose.msra.mxu0 %v907
    %929 = vmatprep.subr.mxu0 0.0
    %930 = vmatpush1.xpose.msra.mxu0 %v910
    %931 = vmatprep.subr.mxu0 0.0
    %932 = vmatpush1.xpose.msra.mxu0 %v913
    %933 = vmatprep.subr.mxu0 0.0
    %934 = vmatpush1.xpose.msra.mxu0 %v916
    %935 = vmatprep.subr.mxu0 0.0
    %936 = vmatpush1.xpose.msra.mxu0 %v919
    %937 = vmatprep.subr.mxu0 0.0
    %938 = vmatpush1.xpose.msra.mxu0 0.0
    %939 = vmatprep.subr.mxu0 0.0
    %940 = vmatpush1.xpose.msra.mxu0 0.0
    %941 = vmatprep.subr.mxu0 0.0
    %942 = vmatpush1.xpose.msra.mxu0 0.0
    %943 = vmatprep.subr.mxu0 0.0
    %944 = vmatpush1.xpose.msra.mxu0 0.0
    %945 = vmatprep.subr.mxu0 0.0
    %946 = vmatpush1.xpose.msra.mxu0 0.0
    %947 = vmatprep.subr.mxu0 0.0
    %948 = vmatpush1.xpose.msra.mxu0 0.0
    %949 = vmatprep.subr.mxu0 0.0
    %950 = vmatpush1.xpose.msra.mxu0 0.0
    %951 = vmatprep.subr.mxu0 0.0
    %952 = vmatpush1.xpose.msra.mxu0 0.0
    %953 = vmatprep.subr.mxu0 0.0
    %954 = vmatpush1.xpose.msra.mxu0 0.0
    %955 = vmatprep.subr.mxu0 0.0
    %956 = vmatpush1.xpose.msra.mxu0 0.0
    %957 = vmatprep.subr.mxu0 0.0
    %958 = vmatpush1.xpose.msra.mxu0 0.0
    %959 = vmatprep.subr.mxu0 0.0
    %960 = vmatpush1.xpose.msra.mxu0 0.0
    %961 = vmatprep.subr.mxu0 0.0
    %962 = vmatpush1.xpose.msra.mxu0 0.0
    %963 = vmatprep.subr.mxu0 0.0
    %964 = vmatpush1.xpose.msra.mxu0 0.0
    %965 = vmatprep.subr.mxu0 0.0
    %966 = vmatpush1.xpose.msra.mxu0 0.0
    %967 = vmatprep.subr.mxu0 0.0
    %968 = vmatpush1.xpose.msra.mxu0 0.0
    %969 = vmatprep.subr.mxu0 0.0
    %970 = vmatpush1.xpose.msra.mxu0 0.0
    %971 = vmatprep.subr.mxu0 0.0
    %972 = vmatpush1.xpose.msra.mxu0 0.0
    %973 = vmatprep.subr.mxu0 0.0
    %974 = vmatpush1.xpose.msra.mxu0 0.0
    %975 = vmatprep.subr.mxu0 0.0
    %976 = vmatpush1.xpose.msra.mxu0 0.0
    %977 = vmatprep.subr.mxu0 0.0
    %978 = vmatpush1.xpose.msra.mxu0 0.0
    %979 = vmatprep.subr.mxu0 0.0
    %980 = vmatpush1.xpose.msra.mxu0 0.0
    %981 = vmatprep.subr.mxu0 0.0
    %982 = vmatpush1.xpose.msra.mxu0 0.0
    %983 = vmatprep.subr.mxu0 0.0
    %984 = vmatpush1.xpose.msra.mxu0 0.0
    %985 = vmatprep.mubr.f32.mxu0 0.0
    %986 = vmatmul.mubr.f32.gmra.mrb[0].mxu0 %v898
    %v987 = vpop.f32.mrb[0].mxu0
    %v988 = vadd.f32 0.0, %v987
    %v989 = vpop.f32.mrb[0].mxu0
    %990 = vmatprep.mubr.f32.mxu0 0.0
    %991 = vmatmul.mubr.f32.gmra.mrb[0].mxu0 %v901
    %v992 = vpop.f32.mrb[0].mxu0
    %v993 = vadd.f32 0.0, %v992
    %v994 = vpop.f32.mrb[0].mxu0
    %995 = vmatprep.mubr.f32.mxu0 0.0
    %996 = vmatmul.mubr.f32.gmra.mrb[0].mxu0 %v904
    %v997 = vpop.f32.mrb[0].mxu0
    %v998 = vadd.f32 0.0, %v997
    %v999 = vpop.f32.mrb[0].mxu0
    %1000 = vmatprep.mubr.f32.mxu0 0.0
    %1001 = vmatmul.mubr.f32.gmra.mrb[0].mxu0 %v907
    %v1002 = vpop.f32.mrb[0].mxu0
    %v1003 = vadd.f32 0.0, %v1002
    %v1004 = vpop.f32.mrb[0].mxu0
    %1005 = vmatprep.mubr.f32.mxu0 0.0
    %1006 = vmatmul.mubr.f32.gmra.mrb[0].mxu0 %v910
    %v1007 = vpop.f32.mrb[0].mxu0
    %v1008 = vadd.f32 0.0, %v1007
    %v1009 = vpop.f32.mrb[0].mxu0
    %1010 = vmatprep.mubr.f32.mxu0 0.0
    %1011 = vmatmul.mubr.f32.gmra.mrb[0].mxu0 %v913
    %v1012 = vpop.f32.mrb[0].mxu0
    %v1013 = vadd.f32 0.0, %v1012
    %v1014 = vpop.f32.mrb[0].mxu0
    %1015 = vmatprep.mubr.f32.mxu0 0.0
    %1016 = vmatmul.mubr.f32.gmra.mrb[0].mxu0 %v916
    %v1017 = vpop.f32.mrb[0].mxu0
    %v1018 = vadd.f32 0.0, %v1017
    %v1019 = vpop.f32.mrb[0].mxu0
    %1020 = vmatprep.mubr.f32.mxu0 0.0
    %1021 = vmatmul.mubr.f32.gmra.mrb[0].mxu0 %v919
    %v1022 = vpop.f32.mrb[0].mxu0
    %v1023 = vadd.f32 0.0, %v1022
    %v1024 = vpop.f32.mrb[0].mxu0
    %1025 = vdwg.mxu0
    %v1027 = vsel %vm122, %v114, 0
    %v1030 = vsel %vm122, %v115, 0
    %v1033 = vsel %vm122, %v116, 0
    %v1036 = vsel %vm122, %v117, 0
    %v1039 = vsel %vm122, %v118, 0
    %v1042 = vsel %vm122, %v119, 0
    %v1045 = vsel %vm122, %v120, 0
    %v1048 = vsel %vm122, %v121, 0
    %1050 = vmatprep.subr.mxu0 0.0
    %1051 = vmatpush1.xpose.msra.mxu0 %v1027
    %1052 = vmatprep.subr.mxu0 0.0
    %1053 = vmatpush1.xpose.msra.mxu0 %v1030
    %1054 = vmatprep.subr.mxu0 0.0
    %1055 = vmatpush1.xpose.msra.mxu0 %v1033
    %1056 = vmatprep.subr.mxu0 0.0
    %1057 = vmatpush1.xpose.msra.mxu0 %v1036
    %1058 = vmatprep.subr.mxu0 0.0
    %1059 = vmatpush1.xpose.msra.mxu0 %v1039
    %1060 = vmatprep.subr.mxu0 0.0
    %1061 = vmatpush1.xpose.msra.mxu0 %v1042
    %1062 = vmatprep.subr.mxu0 0.0
    %1063 = vmatpush1.xpose.msra.mxu0 %v1045
    %1064 = vmatprep.subr.mxu0 0.0
    %1065 = vmatpush1.xpose.msra.mxu0 %v1048
    %1066 = vmatprep.subr.mxu0 0.0
    %1067 = vmatpush1.xpose.msra.mxu0 0.0
    %1068 = vmatprep.subr.mxu0 0.0
    %1069 = vmatpush1.xpose.msra.mxu0 0.0
    %1070 = vmatprep.subr.mxu0 0.0
    %1071 = vmatpush1.xpose.msra.mxu0 0.0
    %1072 = vmatprep.subr.mxu0 0.0
    %1073 = vmatpush1.xpose.msra.mxu0 0.0
    %1074 = vmatprep.subr.mxu0 0.0
    %1075 = vmatpush1.xpose.msra.mxu0 0.0
    %1076 = vmatprep.subr.mxu0 0.0
    %1077 = vmatpush1.xpose.msra.mxu0 0.0
    %1078 = vmatprep.subr.mxu0 0.0
    %1079 = vmatpush1.xpose.msra.mxu0 0.0
    %1080 = vmatprep.subr.mxu0 0.0
    %1081 = vmatpush1.xpose.msra.mxu0 0.0
    %1082 = vmatprep.subr.mxu0 0.0
    %1083 = vmatpush1.xpose.msra.mxu0 0.0
    %1084 = vmatprep.subr.mxu0 0.0
    %1085 = vmatpush1.xpose.msra.mxu0 0.0
    %1086 = vmatprep.subr.mxu0 0.0
    %1087 = vmatpush1.xpose.msra.mxu0 0.0
    %1088 = vmatprep.subr.mxu0 0.0
    %1089 = vmatpush1.xpose.msra.mxu0 0.0
    %1090 = vmatprep.subr.mxu0 0.0
    %1091 = vmatpush1.xpose.msra.mxu0 0.0
    %1092 = vmatprep.subr.mxu0 0.0
    %1093 = vmatpush1.xpose.msra.mxu0 0.0
    %1094 = vmatprep.subr.mxu0 0.0
    %1095 = vmatpush1.xpose.msra.mxu0 0.0
    %1096 = vmatprep.subr.mxu0 0.0
    %1097 = vmatpush1.xpose.msra.mxu0 0.0
    %1098 = vmatprep.subr.mxu0 0.0
    %1099 = vmatpush1.xpose.msra.mxu0 0.0
    %1100 = vmatprep.subr.mxu0 0.0
    %1101 = vmatpush1.xpose.msra.mxu0 0.0
    %1102 = vmatprep.subr.mxu0 0.0
    %1103 = vmatpush1.xpose.msra.mxu0 0.0
    %1104 = vmatprep.subr.mxu0 0.0
    %1105 = vmatpush1.xpose.msra.mxu0 0.0
    %1106 = vmatprep.subr.mxu0 0.0
    %1107 = vmatpush1.xpose.msra.mxu0 0.0
    %1108 = vmatprep.subr.mxu0 0.0
    %1109 = vmatpush1.xpose.msra.mxu0 0.0
    %1110 = vmatprep.subr.mxu0 0.0
    %1111 = vmatpush1.xpose.msra.mxu0 0.0
    %1112 = vmatprep.subr.mxu0 0.0
    %1113 = vmatpush1.xpose.msra.mxu0 0.0
    %1114 = vmatprep.mubr.f32.mxu0 0.0
    %1115 = vmatmul.mubr.f32.gmra.mrb[0].mxu0 %v1027
    %v1116 = vpop.f32.mrb[0].mxu0
    %v1117 = vadd.f32 0.0, %v1116
    %v1118 = vpop.f32.mrb[0].mxu0
    %1119 = vmatprep.mubr.f32.mxu0 0.0
    %1120 = vmatmul.mubr.f32.gmra.mrb[0].mxu0 %v1030
    %v1121 = vpop.f32.mrb[0].mxu0
    %v1122 = vadd.f32 0.0, %v1121
    %v1123 = vpop.f32.mrb[0].mxu0
    %1124 = vmatprep.mubr.f32.mxu0 0.0
    %1125 = vmatmul.mubr.f32.gmra.mrb[0].mxu0 %v1033
    %v1126 = vpop.f32.mrb[0].mxu0
    %v1127 = vadd.f32 0.0, %v1126
    %v1128 = vpop.f32.mrb[0].mxu0
    %1129 = vmatprep.mubr.f32.mxu0 0.0
    %1130 = vmatmul.mubr.f32.gmra.mrb[0].mxu0 %v1036
    %v1131 = vpop.f32.mrb[0].mxu0
    %v1132 = vadd.f32 0.0, %v1131
    %v1133 = vpop.f32.mrb[0].mxu0
    %1134 = vmatprep.mubr.f32.mxu0 0.0
    %1135 = vmatmul.mubr.f32.gmra.mrb[0].mxu0 %v1039
    %v1136 = vpop.f32.mrb[0].mxu0
    %v1137 = vadd.f32 0.0, %v1136
    %v1138 = vpop.f32.mrb[0].mxu0
    %1139 = vmatprep.mubr.f32.mxu0 0.0
    %1140 = vmatmul.mubr.f32.gmra.mrb[0].mxu0 %v1042
    %v1141 = vpop.f32.mrb[0].mxu0
    %v1142 = vadd.f32 0.0, %v1141
    %v1143 = vpop.f32.mrb[0].mxu0
    %1144 = vmatprep.mubr.f32.mxu0 0.0
    %1145 = vmatmul.mubr.f32.gmra.mrb[0].mxu0 %v1045
    %v1146 = vpop.f32.mrb[0].mxu0
    %v1147 = vadd.f32 0.0, %v1146
    %v1148 = vpop.f32.mrb[0].mxu0
    %1149 = vmatprep.mubr.f32.mxu0 0.0
    %1150 = vmatmul.mubr.f32.gmra.mrb[0].mxu0 %v1048
    %v1151 = vpop.f32.mrb[0].mxu0
    %v1152 = vadd.f32 0.0, %v1151
    %v1153 = vpop.f32.mrb[0].mxu0
    %1154 = vdwg.mxu0
    %v1155 = vadd.s32 %v30, 8
    %v1156 = vadd.s32 %v30, 16
    %v1157 = vadd.s32 %v30, 24
    %v1158 = vadd.s32 %v30, 32
    %v1159 = vadd.s32 %v30, 40
    %v1160 = vadd.s32 %v30, 48
    %v1161 = vadd.s32 %v30, 56
    %vm1162 = vcmp.eq.s32.totalorder %v30, %v36
    %vm1163 = vcmp.eq.s32.totalorder %v1155, %v36
    %vm1164 = vcmp.eq.s32.totalorder %v1156, %v36
    %vm1165 = vcmp.eq.s32.totalorder %v1157, %v36
    %vm1166 = vcmp.eq.s32.totalorder %v1158, %v36
    %vm1167 = vcmp.eq.s32.totalorder %v1159, %v36
    %vm1168 = vcmp.eq.s32.totalorder %v1160, %v36
    %vm1169 = vcmp.eq.s32.totalorder %v1161, %v36
    %v1170 = vsel %vm1162, 1, 0
    %v1171 = vsel %vm1163, 1, 0
    %v1172 = vsel %vm1164, 1, 0
    %v1173 = vsel %vm1165, 1, 0
    %v1174 = vsel %vm1166, 1, 0
    %v1175 = vsel %vm1167, 1, 0
    %v1176 = vsel %vm1168, 1, 0
    %v1177 = vsel %vm1169, 1, 0
    %v1178 = vcvt.s32.f32 %v1170
    %v1179 = vcvt.s32.f32 %v1171
    %v1180 = vcvt.s32.f32 %v1172
    %v1181 = vcvt.s32.f32 %v1173
    %v1182 = vcvt.s32.f32 %v1174
    %v1183 = vcvt.s32.f32 %v1175
    %v1184 = vcvt.s32.f32 %v1176
    %v1185 = vcvt.s32.f32 %v1177
    %v1186 = vsub.f32 %v214, %v1178
    %v1187 = vsub.f32 %v219, %v1179
    %v1188 = vsub.f32 %v224, %v1180
    %v1189 = vsub.f32 %v229, %v1181
    %v1190 = vsub.f32 %v234, %v1182
    %v1191 = vsub.f32 %v239, %v1183
    %v1192 = vsub.f32 %v244, %v1184
    %v1193 = vsub.f32 %v249, %v1185
    %v1194 = vsub.f32 %v343, %v1178
    %v1195 = vsub.f32 %v348, %v1179
    %v1196 = vsub.f32 %v353, %v1180
    %v1197 = vsub.f32 %v358, %v1181
    %v1198 = vsub.f32 %v363, %v1182
    %v1199 = vsub.f32 %v368, %v1183
    %v1200 = vsub.f32 %v373, %v1184
    %v1201 = vsub.f32 %v378, %v1185
    %v1202 = vsub.f32 %v472, %v1178
    %v1203 = vsub.f32 %v477, %v1179
    %v1204 = vsub.f32 %v482, %v1180
    %v1205 = vsub.f32 %v487, %v1181
    %v1206 = vsub.f32 %v492, %v1182
    %v1207 = vsub.f32 %v497, %v1183
    %v1208 = vsub.f32 %v502, %v1184
    %v1209 = vsub.f32 %v507, %v1185
    %v1210 = vsub.f32 %v601, %v1178
    %v1211 = vsub.f32 %v606, %v1179
    %v1212 = vsub.f32 %v611, %v1180
    %v1213 = vsub.f32 %v616, %v1181
    %v1214 = vsub.f32 %v621, %v1182
    %v1215 = vsub.f32 %v626, %v1183
    %v1216 = vsub.f32 %v631, %v1184
    %v1217 = vsub.f32 %v636, %v1185
    %v1218 = vsub.f32 %v730, %v1178
    %v1219 = vsub.f32 %v735, %v1179
    %v1220 = vsub.f32 %v740, %v1180
    %v1221 = vsub.f32 %v745, %v1181
    %v1222 = vsub.f32 %v750, %v1182
    %v1223 = vsub.f32 %v755, %v1183
    %v1224 = vsub.f32 %v760, %v1184
    %v1225 = vsub.f32 %v765, %v1185
    %v1226 = vsub.f32 %v859, %v1178
    %v1227 = vsub.f32 %v864, %v1179
    %v1228 = vsub.f32 %v869, %v1180
    %v1229 = vsub.f32 %v874, %v1181
    %v1230 = vsub.f32 %v879, %v1182
    %v1231 = vsub.f32 %v884, %v1183
    %v1232 = vsub.f32 %v889, %v1184
    %v1233 = vsub.f32 %v894, %v1185
    %v1234 = vsub.f32 %v988, %v1178
    %v1235 = vsub.f32 %v993, %v1179
    %v1236 = vsub.f32 %v998, %v1180
    %v1237 = vsub.f32 %v1003, %v1181
    %v1238 = vsub.f32 %v1008, %v1182
    %v1239 = vsub.f32 %v1013, %v1183
    %v1240 = vsub.f32 %v1018, %v1184
    %v1241 = vsub.f32 %v1023, %v1185
    %v1242 = vsub.f32 %v1117, %v1178
    %v1243 = vsub.f32 %v1122, %v1179
    %v1244 = vsub.f32 %v1127, %v1180
    %v1245 = vsub.f32 %v1132, %v1181
    %v1246 = vsub.f32 %v1137, %v1182
    %v1247 = vsub.f32 %v1142, %v1183
    %v1248 = vsub.f32 %v1147, %v1184
    %v1249 = vsub.f32 %v1152, %v1185
    %v1250 = vmul.f32 %v1186, %v1186
    %v1251 = vmul.f32 %v1187, %v1187
    %v1252 = vmul.f32 %v1188, %v1188
    %v1253 = vmul.f32 %v1189, %v1189
    %v1254 = vmul.f32 %v1190, %v1190
    %v1255 = vmul.f32 %v1191, %v1191
    %v1256 = vmul.f32 %v1192, %v1192
    %v1257 = vmul.f32 %v1193, %v1193
    %v1258 = vmul.f32 %v1194, %v1194
    %v1259 = vmul.f32 %v1195, %v1195
    %v1260 = vmul.f32 %v1196, %v1196
    %v1261 = vmul.f32 %v1197, %v1197
    %v1262 = vmul.f32 %v1198, %v1198
    %v1263 = vmul.f32 %v1199, %v1199
    %v1264 = vmul.f32 %v1200, %v1200
    %v1265 = vmul.f32 %v1201, %v1201
    %v1266 = vmul.f32 %v1202, %v1202
    %v1267 = vmul.f32 %v1203, %v1203
    %v1268 = vmul.f32 %v1204, %v1204
    %v1269 = vmul.f32 %v1205, %v1205
    %v1270 = vmul.f32 %v1206, %v1206
    %v1271 = vmul.f32 %v1207, %v1207
    %v1272 = vmul.f32 %v1208, %v1208
    %v1273 = vmul.f32 %v1209, %v1209
    %v1274 = vmul.f32 %v1210, %v1210
    %v1275 = vmul.f32 %v1211, %v1211
    %v1276 = vmul.f32 %v1212, %v1212
    %v1277 = vmul.f32 %v1213, %v1213
    %v1278 = vmul.f32 %v1214, %v1214
    %v1279 = vmul.f32 %v1215, %v1215
    %v1280 = vmul.f32 %v1216, %v1216
    %v1281 = vmul.f32 %v1217, %v1217
    %v1282 = vmul.f32 %v1218, %v1218
    %v1283 = vmul.f32 %v1219, %v1219
    %v1284 = vmul.f32 %v1220, %v1220
    %v1285 = vmul.f32 %v1221, %v1221
    %v1286 = vmul.f32 %v1222, %v1222
    %v1287 = vmul.f32 %v1223, %v1223
    %v1288 = vmul.f32 %v1224, %v1224
    %v1289 = vmul.f32 %v1225, %v1225
    %v1290 = vmul.f32 %v1226, %v1226
    %v1291 = vmul.f32 %v1227, %v1227
    %v1292 = vmul.f32 %v1228, %v1228
    %v1293 = vmul.f32 %v1229, %v1229
    %v1294 = vmul.f32 %v1230, %v1230
    %v1295 = vmul.f32 %v1231, %v1231
    %v1296 = vmul.f32 %v1232, %v1232
    %v1297 = vmul.f32 %v1233, %v1233
    %v1298 = vmul.f32 %v1234, %v1234
    %v1299 = vmul.f32 %v1235, %v1235
    %v1300 = vmul.f32 %v1236, %v1236
    %v1301 = vmul.f32 %v1237, %v1237
    %v1302 = vmul.f32 %v1238, %v1238
    %v1303 = vmul.f32 %v1239, %v1239
    %v1304 = vmul.f32 %v1240, %v1240
    %v1305 = vmul.f32 %v1241, %v1241
    %v1306 = vmul.f32 %v1242, %v1242
    %v1307 = vmul.f32 %v1243, %v1243
    %v1308 = vmul.f32 %v1244, %v1244
    %v1309 = vmul.f32 %v1245, %v1245
    %v1310 = vmul.f32 %v1246, %v1246
    %v1311 = vmul.f32 %v1247, %v1247
    %v1312 = vmul.f32 %v1248, %v1248
    %v1313 = vmul.f32 %v1249, %v1249
    %v1314 = vsel %vm122, %v1250, 0.0
    %1315 = vadd.xlane.f32.xlu0 %v1314
    %v1316 = vpop.xlane.xlu0 %1315
    %v1317 = vsel %vm122, %v1251, 0.0
    %1318 = vadd.xlane.f32.xlu0 %v1317
    %v1319 = vpop.xlane.xlu0 %1318
    %v1320 = vsel %vm122, %v1252, 0.0
    %1321 = vadd.xlane.f32.xlu0 %v1320
    %v1322 = vpop.xlane.xlu0 %1321
    %v1323 = vsel %vm122, %v1253, 0.0
    %1324 = vadd.xlane.f32.xlu0 %v1323
    %v1325 = vpop.xlane.xlu0 %1324
    %v1326 = vsel %vm122, %v1254, 0.0
    %1327 = vadd.xlane.f32.xlu0 %v1326
    %v1328 = vpop.xlane.xlu0 %1327
    %v1329 = vsel %vm122, %v1255, 0.0
    %1330 = vadd.xlane.f32.xlu0 %v1329
    %v1331 = vpop.xlane.xlu0 %1330
    %v1332 = vsel %vm122, %v1256, 0.0
    %1333 = vadd.xlane.f32.xlu0 %v1332
    %v1334 = vpop.xlane.xlu0 %1333
    %v1335 = vsel %vm122, %v1257, 0.0
    %1336 = vadd.xlane.f32.xlu0 %v1335
    %v1337 = vpop.xlane.xlu0 %1336
    %v1338 = vsel %vm122, %v1258, 0.0
    %1339 = vadd.xlane.f32.xlu0 %v1338
    %v1340 = vpop.xlane.xlu0 %1339
    %v1341 = vsel %vm122, %v1259, 0.0
    %1342 = vadd.xlane.f32.xlu0 %v1341
    %v1343 = vpop.xlane.xlu0 %1342
    %v1344 = vsel %vm122, %v1260, 0.0
    %1345 = vadd.xlane.f32.xlu0 %v1344
    %v1346 = vpop.xlane.xlu0 %1345
    %v1347 = vsel %vm122, %v1261, 0.0
    %1348 = vadd.xlane.f32.xlu0 %v1347
    %v1349 = vpop.xlane.xlu0 %1348
    %v1350 = vsel %vm122, %v1262, 0.0
    %1351 = vadd.xlane.f32.xlu0 %v1350
    %v1352 = vpop.xlane.xlu0 %1351
    %v1353 = vsel %vm122, %v1263, 0.0
    %1354 = vadd.xlane.f32.xlu0 %v1353
    %v1355 = vpop.xlane.xlu0 %1354
    %v1356 = vsel %vm122, %v1264, 0.0
    %1357 = vadd.xlane.f32.xlu0 %v1356
    %v1358 = vpop.xlane.xlu0 %1357
    %v1359 = vsel %vm122, %v1265, 0.0
    %1360 = vadd.xlane.f32.xlu0 %v1359
    %v1361 = vpop.xlane.xlu0 %1360
    %v1362 = vsel %vm122, %v1266, 0.0
    %1363 = vadd.xlane.f32.xlu0 %v1362
    %v1364 = vpop.xlane.xlu0 %1363
    %v1365 = vsel %vm122, %v1267, 0.0
    %1366 = vadd.xlane.f32.xlu0 %v1365
    %v1367 = vpop.xlane.xlu0 %1366
    %v1368 = vsel %vm122, %v1268, 0.0
    %1369 = vadd.xlane.f32.xlu0 %v1368
    %v1370 = vpop.xlane.xlu0 %1369
    %v1371 = vsel %vm122, %v1269, 0.0
    %1372 = vadd.xlane.f32.xlu0 %v1371
    %v1373 = vpop.xlane.xlu0 %1372
    %v1374 = vsel %vm122, %v1270, 0.0
    %1375 = vadd.xlane.f32.xlu0 %v1374
    %v1376 = vpop.xlane.xlu0 %1375
    %v1377 = vsel %vm122, %v1271, 0.0
    %1378 = vadd.xlane.f32.xlu0 %v1377
    %v1379 = vpop.xlane.xlu0 %1378
    %v1380 = vsel %vm122, %v1272, 0.0
    %1381 = vadd.xlane.f32.xlu0 %v1380
    %v1382 = vpop.xlane.xlu0 %1381
    %v1383 = vsel %vm122, %v1273, 0.0
    %1384 = vadd.xlane.f32.xlu0 %v1383
    %v1385 = vpop.xlane.xlu0 %1384
    %v1386 = vsel %vm122, %v1274, 0.0
    %1387 = vadd.xlane.f32.xlu0 %v1386
    %v1388 = vpop.xlane.xlu0 %1387
    %v1389 = vsel %vm122, %v1275, 0.0
    %1390 = vadd.xlane.f32.xlu0 %v1389
    %v1391 = vpop.xlane.xlu0 %1390
    %v1392 = vsel %vm122, %v1276, 0.0
    %1393 = vadd.xlane.f32.xlu0 %v1392
    %v1394 = vpop.xlane.xlu0 %1393
    %v1395 = vsel %vm122, %v1277, 0.0
    %1396 = vadd.xlane.f32.xlu0 %v1395
    %v1397 = vpop.xlane.xlu0 %1396
    %v1398 = vsel %vm122, %v1278, 0.0
    %1399 = vadd.xlane.f32.xlu0 %v1398
    %v1400 = vpop.xlane.xlu0 %1399
    %v1401 = vsel %vm122, %v1279, 0.0
    %1402 = vadd.xlane.f32.xlu0 %v1401
    %v1403 = vpop.xlane.xlu0 %1402
    %v1404 = vsel %vm122, %v1280, 0.0
    %1405 = vadd.xlane.f32.xlu0 %v1404
    %v1406 = vpop.xlane.xlu0 %1405
    %v1407 = vsel %vm122, %v1281, 0.0
    %1408 = vadd.xlane.f32.xlu0 %v1407
    %v1409 = vpop.xlane.xlu0 %1408
    %v1410 = vsel %vm122, %v1282, 0.0
    %1411 = vadd.xlane.f32.xlu0 %v1410
    %v1412 = vpop.xlane.xlu0 %1411
    %v1413 = vsel %vm122, %v1283, 0.0
    %1414 = vadd.xlane.f32.xlu0 %v1413
    %v1415 = vpop.xlane.xlu0 %1414
    %v1416 = vsel %vm122, %v1284, 0.0
    %1417 = vadd.xlane.f32.xlu0 %v1416
    %v1418 = vpop.xlane.xlu0 %1417
    %v1419 = vsel %vm122, %v1285, 0.0
    %1420 = vadd.xlane.f32.xlu0 %v1419
    %v1421 = vpop.xlane.xlu0 %1420
    %v1422 = vsel %vm122, %v1286, 0.0
    %1423 = vadd.xlane.f32.xlu0 %v1422
    %v1424 = vpop.xlane.xlu0 %1423
    %v1425 = vsel %vm122, %v1287, 0.0
    %1426 = vadd.xlane.f32.xlu0 %v1425
    %v1427 = vpop.xlane.xlu0 %1426
    %v1428 = vsel %vm122, %v1288, 0.0
    %1429 = vadd.xlane.f32.xlu0 %v1428
    %v1430 = vpop.xlane.xlu0 %1429
    %v1431 = vsel %vm122, %v1289, 0.0
    %1432 = vadd.xlane.f32.xlu0 %v1431
    %v1433 = vpop.xlane.xlu0 %1432
    %v1434 = vsel %vm122, %v1290, 0.0
    %1435 = vadd.xlane.f32.xlu0 %v1434
    %v1436 = vpop.xlane.xlu0 %1435
    %v1437 = vsel %vm122, %v1291, 0.0
    %1438 = vadd.xlane.f32.xlu0 %v1437
    %v1439 = vpop.xlane.xlu0 %1438
    %v1440 = vsel %vm122, %v1292, 0.0
    %1441 = vadd.xlane.f32.xlu0 %v1440
    %v1442 = vpop.xlane.xlu0 %1441
    %v1443 = vsel %vm122, %v1293, 0.0
    %1444 = vadd.xlane.f32.xlu0 %v1443
    %v1445 = vpop.xlane.xlu0 %1444
    %v1446 = vsel %vm122, %v1294, 0.0
    %1447 = vadd.xlane.f32.xlu0 %v1446
    %v1448 = vpop.xlane.xlu0 %1447
    %v1449 = vsel %vm122, %v1295, 0.0
    %1450 = vadd.xlane.f32.xlu0 %v1449
    %v1451 = vpop.xlane.xlu0 %1450
    %v1452 = vsel %vm122, %v1296, 0.0
    %1453 = vadd.xlane.f32.xlu0 %v1452
    %v1454 = vpop.xlane.xlu0 %1453
    %v1455 = vsel %vm122, %v1297, 0.0
    %1456 = vadd.xlane.f32.xlu0 %v1455
    %v1457 = vpop.xlane.xlu0 %1456
    %v1458 = vsel %vm122, %v1298, 0.0
    %1459 = vadd.xlane.f32.xlu0 %v1458
    %v1460 = vpop.xlane.xlu0 %1459
    %v1461 = vsel %vm122, %v1299, 0.0
    %1462 = vadd.xlane.f32.xlu0 %v1461
    %v1463 = vpop.xlane.xlu0 %1462
    %v1464 = vsel %vm122, %v1300, 0.0
    %1465 = vadd.xlane.f32.xlu0 %v1464
    %v1466 = vpop.xlane.xlu0 %1465
    %v1467 = vsel %vm122, %v1301, 0.0
    %1468 = vadd.xlane.f32.xlu0 %v1467
    %v1469 = vpop.xlane.xlu0 %1468
    %v1470 = vsel %vm122, %v1302, 0.0
    %1471 = vadd.xlane.f32.xlu0 %v1470
    %v1472 = vpop.xlane.xlu0 %1471
    %v1473 = vsel %vm122, %v1303, 0.0
    %1474 = vadd.xlane.f32.xlu0 %v1473
    %v1475 = vpop.xlane.xlu0 %1474
    %v1476 = vsel %vm122, %v1304, 0.0
    %1477 = vadd.xlane.f32.xlu0 %v1476
    %v1478 = vpop.xlane.xlu0 %1477
    %v1479 = vsel %vm122, %v1305, 0.0
    %1480 = vadd.xlane.f32.xlu0 %v1479
    %v1481 = vpop.xlane.xlu0 %1480
    %v1482 = vsel %vm122, %v1306, 0.0
    %1483 = vadd.xlane.f32.xlu0 %v1482
    %v1484 = vpop.xlane.xlu0 %1483
    %v1485 = vsel %vm122, %v1307, 0.0
    %1486 = vadd.xlane.f32.xlu0 %v1485
    %v1487 = vpop.xlane.xlu0 %1486
    %v1488 = vsel %vm122, %v1308, 0.0
    %1489 = vadd.xlane.f32.xlu0 %v1488
    %v1490 = vpop.xlane.xlu0 %1489
    %v1491 = vsel %vm122, %v1309, 0.0
    %1492 = vadd.xlane.f32.xlu0 %v1491
    %v1493 = vpop.xlane.xlu0 %1492
    %v1494 = vsel %vm122, %v1310, 0.0
    %1495 = vadd.xlane.f32.xlu0 %v1494
    %v1496 = vpop.xlane.xlu0 %1495
    %v1497 = vsel %vm122, %v1311, 0.0
    %1498 = vadd.xlane.f32.xlu0 %v1497
    %v1499 = vpop.xlane.xlu0 %1498
    %v1500 = vsel %vm122, %v1312, 0.0
    %1501 = vadd.xlane.f32.xlu0 %v1500
    %v1502 = vpop.xlane.xlu0 %1501
    %v1503 = vsel %vm122, %v1313, 0.0
    %1504 = vadd.xlane.f32.xlu0 %v1503
    %v1505 = vpop.xlane.xlu0 %1504
    %v1570 = vlaneseq
    %v1571 = vshrl.u32 %v1570, 7
    %v1572 = vsub.s32 %v36, %v1571
    %v1573 = vrot.slane %v1316, %v1572
    %v1574 = vadd.s32 %v36, 4294967288
    %v1575 = vlaneseq
    %v1576 = vshrl.u32 %v1575, 7
    %v1577 = vsub.s32 %v1574, %v1576
    %v1578 = vrot.slane %v1319, %v1577
    %vm1579 = vcmask 130112
    %v1580 = vsel %vm1579, %v1578, %v1573
    %v1581 = vadd.s32 %v36, 4294967280
    %v1582 = vlaneseq
    %v1583 = vshrl.u32 %v1582, 7
    %v1584 = vsub.s32 %v1581, %v1583
    %v1585 = vrot.slane %v1322, %v1584
    %vm1586 = vcmask 195712
    %v1587 = vsel %vm1586, %v1585, %v1580
    %v1588 = vadd.s32 %v36, 4294967272
    %v1589 = vlaneseq
    %v1590 = vshrl.u32 %v1589, 7
    %v1591 = vsub.s32 %v1588, %v1590
    %v1592 = vrot.slane %v1325, %v1591
    %vm1593 = vcmask 261312
    %v1594 = vsel %vm1593, %v1592, %v1587
    %v1595 = vadd.s32 %v36, 4294967264
    %v1596 = vlaneseq
    %v1597 = vshrl.u32 %v1596, 7
    %v1598 = vsub.s32 %v1595, %v1597
    %v1599 = vrot.slane %v1328, %v1598
    %vm1600 = vcmask 326912
    %v1601 = vsel %vm1600, %v1599, %v1594
    %v1602 = vadd.s32 %v36, 4294967256
    %v1603 = vlaneseq
    %v1604 = vshrl.u32 %v1603, 7
    %v1605 = vsub.s32 %v1602, %v1604
    %v1606 = vrot.slane %v1331, %v1605
    %vm1607 = vcmask 392512
    %v1608 = vsel %vm1607, %v1606, %v1601
    %v1609 = vadd.s32 %v36, 4294967248
    %v1610 = vlaneseq
    %v1611 = vshrl.u32 %v1610, 7
    %v1612 = vsub.s32 %v1609, %v1611
    %v1613 = vrot.slane %v1334, %v1612
    %vm1614 = vcmask 458112
    %v1615 = vsel %vm1614, %v1613, %v1608
    %v1616 = vadd.s32 %v36, 4294967240
    %v1617 = vlaneseq
    %v1618 = vshrl.u32 %v1617, 7
    %v1619 = vsub.s32 %v1616, %v1618
    %v1620 = vrot.slane %v1337, %v1619
    %vm1621 = vcmask 523712
    %v1622 = vsel %vm1621, %v1620, %v1615
    %v1623 = vlaneseq
    %v1624 = vshrl.u32 %v1623, 7
    %v1625 = vsub.s32 %v36, %v1624
    %v1626 = vrot.slane %v1340, %v1625
    %v1627 = vlaneseq
    %v1628 = vshrl.u32 %v1627, 7
    %v1629 = vsub.s32 %v1574, %v1628
    %v1630 = vrot.slane %v1343, %v1629
    %v1631 = vsel %vm1579, %v1630, %v1626
    %v1632 = vlaneseq
    %v1633 = vshrl.u32 %v1632, 7
    %v1634 = vsub.s32 %v1581, %v1633
    %v1635 = vrot.slane %v1346, %v1634
    %v1636 = vsel %vm1586, %v1635, %v1631
    %v1637 = vlaneseq
    %v1638 = vshrl.u32 %v1637, 7
    %v1639 = vsub.s32 %v1588, %v1638
    %v1640 = vrot.slane %v1349, %v1639
    %v1641 = vsel %vm1593, %v1640, %v1636
    %v1642 = vlaneseq
    %v1643 = vshrl.u32 %v1642, 7
    %v1644 = vsub.s32 %v1595, %v1643
    %v1645 = vrot.slane %v1352, %v1644
    %v1646 = vsel %vm1600, %v1645, %v1641
    %v1647 = vlaneseq
    %v1648 = vshrl.u32 %v1647, 7
    %v1649 = vsub.s32 %v1602, %v1648
    %v1650 = vrot.slane %v1355, %v1649
    %v1651 = vsel %vm1607, %v1650, %v1646
    %v1652 = vlaneseq
    %v1653 = vshrl.u32 %v1652, 7
    %v1654 = vsub.s32 %v1609, %v1653
    %v1655 = vrot.slane %v1358, %v1654
    %v1656 = vsel %vm1614, %v1655, %v1651
    %v1657 = vlaneseq
    %v1658 = vshrl.u32 %v1657, 7
    %v1659 = vsub.s32 %v1616, %v1658
    %v1660 = vrot.slane %v1361, %v1659
    %v1661 = vsel %vm1621, %v1660, %v1656
    %v1662 = vlaneseq
    %v1663 = vshrl.u32 %v1662, 7
    %v1664 = vsub.s32 %v36, %v1663
    %v1665 = vrot.slane %v1364, %v1664
    %v1666 = vlaneseq
    %v1667 = vshrl.u32 %v1666, 7
    %v1668 = vsub.s32 %v1574, %v1667
    %v1669 = vrot.slane %v1367, %v1668
    %v1670 = vsel %vm1579, %v1669, %v1665
    %v1671 = vlaneseq
    %v1672 = vshrl.u32 %v1671, 7
    %v1673 = vsub.s32 %v1581, %v1672
    %v1674 = vrot.slane %v1370, %v1673
    %v1675 = vsel %vm1586, %v1674, %v1670
    %v1676 = vlaneseq
    %v1677 = vshrl.u32 %v1676, 7
    %v1678 = vsub.s32 %v1588, %v1677
    %v1679 = vrot.slane %v1373, %v1678
    %v1680 = vsel %vm1593, %v1679, %v1675
    %v1681 = vlaneseq
    %v1682 = vshrl.u32 %v1681, 7
    %v1683 = vsub.s32 %v1595, %v1682
    %v1684 = vrot.slane %v1376, %v1683
    %v1685 = vsel %vm1600, %v1684, %v1680
    %v1686 = vlaneseq
    %v1687 = vshrl.u32 %v1686, 7
    %v1688 = vsub.s32 %v1602, %v1687
    %v1689 = vrot.slane %v1379, %v1688
    %v1690 = vsel %vm1607, %v1689, %v1685
    %v1691 = vlaneseq
    %v1692 = vshrl.u32 %v1691, 7
    %v1693 = vsub.s32 %v1609, %v1692
    %v1694 = vrot.slane %v1382, %v1693
    %v1695 = vsel %vm1614, %v1694, %v1690
    %v1696 = vlaneseq
    %v1697 = vshrl.u32 %v1696, 7
    %v1698 = vsub.s32 %v1616, %v1697
    %v1699 = vrot.slane %v1385, %v1698
    %v1700 = vsel %vm1621, %v1699, %v1695
    %v1701 = vlaneseq
    %v1702 = vshrl.u32 %v1701, 7
    %v1703 = vsub.s32 %v36, %v1702
    %v1704 = vrot.slane %v1388, %v1703
    %v1705 = vlaneseq
    %v1706 = vshrl.u32 %v1705, 7
    %v1707 = vsub.s32 %v1574, %v1706
    %v1708 = vrot.slane %v1391, %v1707
    %v1709 = vsel %vm1579, %v1708, %v1704
    %v1710 = vlaneseq
    %v1711 = vshrl.u32 %v1710, 7
    %v1712 = vsub.s32 %v1581, %v1711
    %v1713 = vrot.slane %v1394, %v1712
    %v1714 = vsel %vm1586, %v1713, %v1709
    %v1715 = vlaneseq
    %v1716 = vshrl.u32 %v1715, 7
    %v1717 = vsub.s32 %v1588, %v1716
    %v1718 = vrot.slane %v1397, %v1717
    %v1719 = vsel %vm1593, %v1718, %v1714
    %v1720 = vlaneseq
    %v1721 = vshrl.u32 %v1720, 7
    %v1722 = vsub.s32 %v1595, %v1721
    %v1723 = vrot.slane %v1400, %v1722
    %v1724 = vsel %vm1600, %v1723, %v1719
    %v1725 = vlaneseq
    %v1726 = vshrl.u32 %v1725, 7
    %v1727 = vsub.s32 %v1602, %v1726
    %v1728 = vrot.slane %v1403, %v1727
    %v1729 = vsel %vm1607, %v1728, %v1724
    %v1730 = vlaneseq
    %v1731 = vshrl.u32 %v1730, 7
    %v1732 = vsub.s32 %v1609, %v1731
    %v1733 = vrot.slane %v1406, %v1732
    %v1734 = vsel %vm1614, %v1733, %v1729
    %v1735 = vlaneseq
    %v1736 = vshrl.u32 %v1735, 7
    %v1737 = vsub.s32 %v1616, %v1736
    %v1738 = vrot.slane %v1409, %v1737
    %v1739 = vsel %vm1621, %v1738, %v1734
    %v1740 = vlaneseq
    %v1741 = vshrl.u32 %v1740, 7
    %v1742 = vsub.s32 %v36, %v1741
    %v1743 = vrot.slane %v1412, %v1742
    %v1744 = vlaneseq
    %v1745 = vshrl.u32 %v1744, 7
    %v1746 = vsub.s32 %v1574, %v1745
    %v1747 = vrot.slane %v1415, %v1746
    %v1748 = vsel %vm1579, %v1747, %v1743
    %v1749 = vlaneseq
    %v1750 = vshrl.u32 %v1749, 7
    %v1751 = vsub.s32 %v1581, %v1750
    %v1752 = vrot.slane %v1418, %v1751
    %v1753 = vsel %vm1586, %v1752, %v1748
    %v1754 = vlaneseq
    %v1755 = vshrl.u32 %v1754, 7
    %v1756 = vsub.s32 %v1588, %v1755
    %v1757 = vrot.slane %v1421, %v1756
    %v1758 = vsel %vm1593, %v1757, %v1753
    %v1759 = vlaneseq
    %v1760 = vshrl.u32 %v1759, 7
    %v1761 = vsub.s32 %v1595, %v1760
    %v1762 = vrot.slane %v1424, %v1761
    %v1763 = vsel %vm1600, %v1762, %v1758
    %v1764 = vlaneseq
    %v1765 = vshrl.u32 %v1764, 7
    %v1766 = vsub.s32 %v1602, %v1765
    %v1767 = vrot.slane %v1427, %v1766
    %v1768 = vsel %vm1607, %v1767, %v1763
    %v1769 = vlaneseq
    %v1770 = vshrl.u32 %v1769, 7
    %v1771 = vsub.s32 %v1609, %v1770
    %v1772 = vrot.slane %v1430, %v1771
    %v1773 = vsel %vm1614, %v1772, %v1768
    %v1774 = vlaneseq
    %v1775 = vshrl.u32 %v1774, 7
    %v1776 = vsub.s32 %v1616, %v1775
    %v1777 = vrot.slane %v1433, %v1776
    %v1778 = vsel %vm1621, %v1777, %v1773
    %v1779 = vlaneseq
    %v1780 = vshrl.u32 %v1779, 7
    %v1781 = vsub.s32 %v36, %v1780
    %v1782 = vrot.slane %v1436, %v1781
    %v1783 = vlaneseq
    %v1784 = vshrl.u32 %v1783, 7
    %v1785 = vsub.s32 %v1574, %v1784
    %v1786 = vrot.slane %v1439, %v1785
    %v1787 = vsel %vm1579, %v1786, %v1782
    %v1788 = vlaneseq
    %v1789 = vshrl.u32 %v1788, 7
    %v1790 = vsub.s32 %v1581, %v1789
    %v1791 = vrot.slane %v1442, %v1790
    %v1792 = vsel %vm1586, %v1791, %v1787
    %v1793 = vlaneseq
    %v1794 = vshrl.u32 %v1793, 7
    %v1795 = vsub.s32 %v1588, %v1794
    %v1796 = vrot.slane %v1445, %v1795
    %v1797 = vsel %vm1593, %v1796, %v1792
    %v1798 = vlaneseq
    %v1799 = vshrl.u32 %v1798, 7
    %v1800 = vsub.s32 %v1595, %v1799
    %v1801 = vrot.slane %v1448, %v1800
    %v1802 = vsel %vm1600, %v1801, %v1797
    %v1803 = vlaneseq
    %v1804 = vshrl.u32 %v1803, 7
    %v1805 = vsub.s32 %v1602, %v1804
    %v1806 = vrot.slane %v1451, %v1805
    %v1807 = vsel %vm1607, %v1806, %v1802
    %v1808 = vlaneseq
    %v1809 = vshrl.u32 %v1808, 7
    %v1810 = vsub.s32 %v1609, %v1809
    %v1811 = vrot.slane %v1454, %v1810
    %v1812 = vsel %vm1614, %v1811, %v1807
    %v1813 = vlaneseq
    %v1814 = vshrl.u32 %v1813, 7
    %v1815 = vsub.s32 %v1616, %v1814
    %v1816 = vrot.slane %v1457, %v1815
    %v1817 = vsel %vm1621, %v1816, %v1812
    %v1818 = vlaneseq
    %v1819 = vshrl.u32 %v1818, 7
    %v1820 = vsub.s32 %v36, %v1819
    %v1821 = vrot.slane %v1460, %v1820
    %v1822 = vlaneseq
    %v1823 = vshrl.u32 %v1822, 7
    %v1824 = vsub.s32 %v1574, %v1823
    %v1825 = vrot.slane %v1463, %v1824
    %v1826 = vsel %vm1579, %v1825, %v1821
    %v1827 = vlaneseq
    %v1828 = vshrl.u32 %v1827, 7
    %v1829 = vsub.s32 %v1581, %v1828
    %v1830 = vrot.slane %v1466, %v1829
    %v1831 = vsel %vm1586, %v1830, %v1826
    %v1832 = vlaneseq
    %v1833 = vshrl.u32 %v1832, 7
    %v1834 = vsub.s32 %v1588, %v1833
    %v1835 = vrot.slane %v1469, %v1834
    %v1836 = vsel %vm1593, %v1835, %v1831
    %v1837 = vlaneseq
    %v1838 = vshrl.u32 %v1837, 7
    %v1839 = vsub.s32 %v1595, %v1838
    %v1840 = vrot.slane %v1472, %v1839
    %v1841 = vsel %vm1600, %v1840, %v1836
    %v1842 = vlaneseq
    %v1843 = vshrl.u32 %v1842, 7
    %v1844 = vsub.s32 %v1602, %v1843
    %v1845 = vrot.slane %v1475, %v1844
    %v1846 = vsel %vm1607, %v1845, %v1841
    %v1847 = vlaneseq
    %v1848 = vshrl.u32 %v1847, 7
    %v1849 = vsub.s32 %v1609, %v1848
    %v1850 = vrot.slane %v1478, %v1849
    %v1851 = vsel %vm1614, %v1850, %v1846
    %v1852 = vlaneseq
    %v1853 = vshrl.u32 %v1852, 7
    %v1854 = vsub.s32 %v1616, %v1853
    %v1855 = vrot.slane %v1481, %v1854
    %v1856 = vsel %vm1621, %v1855, %v1851
    %v1857 = vlaneseq
    %v1858 = vshrl.u32 %v1857, 7
    %v1859 = vsub.s32 %v36, %v1858
    %v1860 = vrot.slane %v1484, %v1859
    %v1861 = vlaneseq
    %v1862 = vshrl.u32 %v1861, 7
    %v1863 = vsub.s32 %v1574, %v1862
    %v1864 = vrot.slane %v1487, %v1863
    %v1865 = vsel %vm1579, %v1864, %v1860
    %v1866 = vlaneseq
    %v1867 = vshrl.u32 %v1866, 7
    %v1868 = vsub.s32 %v1581, %v1867
    %v1869 = vrot.slane %v1490, %v1868
    %v1870 = vsel %vm1586, %v1869, %v1865
    %v1871 = vlaneseq
    %v1872 = vshrl.u32 %v1871, 7
    %v1873 = vsub.s32 %v1588, %v1872
    %v1874 = vrot.slane %v1493, %v1873
    %v1875 = vsel %vm1593, %v1874, %v1870
    %v1876 = vlaneseq
    %v1877 = vshrl.u32 %v1876, 7
    %v1878 = vsub.s32 %v1595, %v1877
    %v1879 = vrot.slane %v1496, %v1878
    %v1880 = vsel %vm1600, %v1879, %v1875
    %v1881 = vlaneseq
    %v1882 = vshrl.u32 %v1881, 7
    %v1883 = vsub.s32 %v1602, %v1882
    %v1884 = vrot.slane %v1499, %v1883
    %v1885 = vsel %vm1607, %v1884, %v1880
    %v1886 = vlaneseq
    %v1887 = vshrl.u32 %v1886, 7
    %v1888 = vsub.s32 %v1609, %v1887
    %v1889 = vrot.slane %v1502, %v1888
    %v1890 = vsel %vm1614, %v1889, %v1885
    %v1891 = vlaneseq
    %v1892 = vshrl.u32 %v1891, 7
    %v1893 = vsub.s32 %v1616, %v1892
    %v1894 = vrot.slane %v1505, %v1893
    %v1895 = vsel %vm1621, %v1894, %v1890
    %vm1896 = vcmask 1041409
    %v1897 = vsel %vm1896, %v1661, %v1622
    %vm1898 = vcmask 1042434
    %v1899 = vsel %vm1898, %v1700, %v1897
    %vm1900 = vcmask 1043459
    %v1901 = vsel %vm1900, %v1739, %v1899
    %vm1902 = vcmask 1044484
    %v1903 = vsel %vm1902, %v1778, %v1901
    %vm1904 = vcmask 1045509
    %v1905 = vsel %vm1904, %v1817, %v1903
    %vm1906 = vcmask 1046534
    %v1907 = vsel %vm1906, %v1856, %v1905
    %vm1908 = vcmask 1047559
    %v1909 = vsel %vm1908, %v1895, %v1907
    %v1911 = vsel %vm122, %v1909, 0.0
    %1912 = vadd.xlane.f32.xlu0 %v1911
    %v1913 = vpop.xlane.xlu0 %1912
    %v1914 = vrsqrt.pop %v1913
    %v1915 = vmul.f32 %v1913, %v1914
    %vm1916 = vcmp.eq.f32.partialorder %v1913, inf
    %v1917 = vsel %vm1916, %v1913, %v1915
    %vm1918 = vcmp.eq.f32.partialorder %v1913, 0.0
    %v1919 = vand.u32 %v1913, 2147483648
    %v1920 = vsel %vm1918, %v1919, %v1917
    %v1921 = vsel %vm34, %v1920, 0.0
    %vm1922 = vcmask 7168
    %v1923 = vsel %vm1922, %v1921, 0.0
    %1924 = vadd.xlane.f32.xlu0 %v1923
    %v1925 = vpop.xlane.xlu0 %1924
    %v1926 = vrot.slane %v1925, 4
    %v1927 = vadd.f32 %v1925, %v1926
    %v1928 = vrot.slane %v1927, 2
    %v1929 = vadd.f32 %v1927, %v1928
    %v1930 = vrot.slane %v1929, 1
    %v1931 = vadd.f32 %v1929, %v1930
    %s1932 = vtos %v1931
    %s1933 = smul.f32 %s1932, 0.001
    %s1934 = ssub.f32 %s1933, %s57
    %v1935 = vstv %s1934
    %1936 = vst [vmem:[#allocation5] sm:$0xff] %v1935
    // Predicated region
    $region18: #{tpu_custom_call.1} parent=1 // pred_check
      _
    $region19: #{tpu_custom_call.1} parent=1 // pred_check_branch
      %1938 = sbr.rel (0) target = $region21
    $region20: #{tpu_custom_call.1} parent=1 // pred_region
      %s1940 = ssub.s32 128, 128
      %1941 = vsyncadd [#allocation4], %s1940
      %s1943 = sshll.u32 [#allocation5], 4
      %s1944 = int_to_ptr.vmem [resolvable:$true] %s1943
      %1946 = dma.vmem_to_hbm [thread:$0]  %s1944, 128, %s3, [#allocation4]
    $region21: #{tpu_custom_call.1} parent=1 // pred_fallthru
      _
    // Predicated region
    $region22: #{tpu_custom_call.1} parent=1 // pred_check
      _
    $region23: #{tpu_custom_call.1} parent=1 // pred_check_branch
      %1948 = sbr.rel (0) target = $region25
    $region24: #{tpu_custom_call.1} parent=1 // pred_region
      %1949 = dma.done [#allocation4], 128
    $region25: #{tpu_custom_call.1} parent=1 // pred_fallthru
      _
    %1950 = vsyncpa [#allocation3], 1
    %1951 = vsyncpa [#allocation4], 1

</llo_original>
